<compile_context>
chip_gen: v7x
topology: tpu7x:2x2x1
jax: 0.10.0
libtpu: 0.0.40
codegen_flags: <defaults>
</compile_context>

<pallas_src>
import functools

import numpy as np
import jax
import jax.numpy as jnp
from jax import lax
from jax.experimental import pallas as pl
from jax.experimental.pallas import tpu as pltpu


# ---------------------------------------------------------------------------
# Pallas kernel: one tile of P pixels, all 3 channels, fully fused.
# ---------------------------------------------------------------------------
def _trilerp_kernel(lut_ref, x_ref, o_ref, *, dim, binsize):
    # lut_ref: (3*dim, dim*dim)  with lut_ref[c*dim + r, b*dim + g] = lut[c,b,g,r]
    # x_ref  : (1, 3, P)   pixel values (r,g,b rows), P on the lane axis
    # o_ref  : (1, 3, P)
    P = x_ref.shape[-1]
    d2 = dim * dim

    rgb = x_ref[0]                                  # (3, P) lane-dense load
    s = rgb * (1.0 / binsize)                       # scaled coordinates
    idx_f = jnp.floor(s)
    frac = s - idx_f                                # fractional part in [0,1)
    idx = idx_f.astype(jnp.int32)

    r_id = idx[0:1, :]
    g_id = idx[1:2, :]
    b_id = idx[2:3, :]                              # (1, P) int32
    r_d = frac[0:1, :]
    g_d = frac[1:2, :]
    b_d = frac[2:3, :]                              # (1, P) f32

    # One-hot over the flattened (b, g) plane carrying the bilinear weights.
    bg = b_id * dim + g_id                          # (1, P)
    u = lax.broadcasted_iota(jnp.int32, (d2, P), 0)  # (d2, P)
    oh = (jnp.where(u == bg,           (1.0 - b_d) * (1.0 - g_d), 0.0)
          + jnp.where(u == bg + 1,       (1.0 - b_d) * g_d,         0.0)
          + jnp.where(u == bg + dim,     b_d * (1.0 - g_d),         0.0)
          + jnp.where(u == bg + dim + 1, b_d * g_d,                 0.0))

    # Single MXU contraction: (3*dim, d2) x (d2, P) -> (3*dim, P).
    # Row c*dim + r holds the (g,b)-bilinear-interpolated LUT value at grid
    # point r of output channel c, for every pixel in the tile.
    lines = jnp.dot(lut_ref[...], oh,
                    preferred_element_type=jnp.float32,
                    precision=lax.Precision.HIGHEST)

    # Final 1-D linear interpolation along r (shared across the 3 channels).
    i = lax.broadcasted_iota(jnp.int32, (dim, P), 0)
    w_r = (jnp.where(i == r_id, 1.0 - r_d, 0.0)
           + jnp.where(i == r_id + 1, r_d, 0.0))    # (dim, P)

    outs = []
    for c in range(3):
        seg = lines[c * dim:(c + 1) * dim, :]        # (dim, P) static slice
        outs.append(jnp.sum(seg * w_r, axis=0, keepdims=True))   # (1, P)
    o_ref[0] = jnp.concatenate(outs, axis=0)         # (3, P) lane-dense store


# ---------------------------------------------------------------------------
# Wrapper (matches TrilinearInterpolation.forward: returns (lut, output))
# ---------------------------------------------------------------------------
def trilinear_forward(lut, x, *, pix_tile=None):
    """lut: (3, dim, dim, dim) float32; x: (N, 3, H, W) float32 in [0, 1)."""
    N, C, H, W = x.shape
    assert C == 3, "expects 3-channel input"
    dim = lut.shape[-1]
    assert lut.shape == (3, dim, dim, dim)
    HW = H * W

    if pix_tile is None:
        pix_tile = HW
        for cand in (2048, 1024, 512, 256, 128):
            if HW % cand == 0:
                pix_tile = cand
                break
    assert HW % pix_tile == 0

    binsize = 1.000001 / (dim - 1)

    # Tiny one-time weight rearrangement: LUT2T[c*dim + r, b*dim + g] = lut[c,b,g,r]
    lut2t = jnp.transpose(lut, (0, 3, 1, 2)).reshape(3 * dim, dim * dim)
    x3 = x.reshape(N, 3, HW)                         # free metadata reshape

    kern = functools.partial(_trilerp_kernel, dim=dim, binsize=binsize)
    out3 = pl.pallas_call(
        kern,
        out_shape=jax.ShapeDtypeStruct((N, 3, HW), jnp.float32),
        grid=(N, HW // pix_tile),
        in_specs=[
            pl.BlockSpec((3 * dim, dim * dim), lambda n, t: (0, 0)),   # LUT (VMEM)
            pl.BlockSpec((1, 3, pix_tile), lambda n, t: (n, 0, t)),    # pixels
        ],
        out_specs=pl.BlockSpec((1, 3, pix_tile), lambda n, t: (n, 0, t)),
        compiler_params=pltpu.CompilerParams(
            dimension_semantics=("parallel", "parallel")),
    )(lut2t, x3)

    return lut, out3.reshape(N, 3, H, W)


# ---------------------------------------------------------------------------
# Pure-JAX reference (same math as the CUDA TriLinearForward kernel)
# ---------------------------------------------------------------------------
def ref_trilinear(lut, x):
    N, C, H, W = x.shape
    dim = lut.shape[-1]
    binsize = 1.000001 / (dim - 1)

    s = x * (1.0 / binsize)
    idx = jnp.floor(s)
    frac = s - idx
    idx = idx.astype(jnp.int32)

    r_id, g_id, b_id = idx[:, 0], idx[:, 1], idx[:, 2]       # (N,H,W)
    r_d, g_d, b_d = frac[:, 0], frac[:, 1], frac[:, 2]

    lut_flat = lut.reshape(3, dim * dim * dim)

    def corner(db, dg, dr):
        fid = (r_id + dr) + (g_id + dg) * dim + (b_id + db) * dim * dim
        return lut_flat[:, fid]                              # (3, N, H, W)

    def w(d, t):
        return t if d else (1.0 - t)

    out = jnp.zeros((3, N, H, W), jnp.float32)
    for db in (0, 1):
        for dg in (0, 1):
            for dr in (0, 1):
                wgt = w(dr, r_d) * w(dg, g_d) * w(db, b_d)   # (N,H,W)
                out = out + wgt[None] * corner(db, dg, dr)
    return jnp.transpose(out, (1, 0, 2, 3))                  # (N,3,H,W)


if __name__ == "__main__":
    key = jax.random.PRNGKey(0)
    k_lut, k_x = jax.random.split(key)

    N, H, W = 2, 16, 16
    dim = 9                                    # 3D LUT of size dim^3 per channel

    lut = jax.random.normal(k_lut, (3, dim, dim, dim), jnp.float32)
    x = jax.random.uniform(k_x, (N, 3, H, W), jnp.float32)   # values in [0, 1)

    lut_out, out = trilinear_forward(lut, x)
    out = jax.block_until_ready(out)
    ref = jax.block_until_ready(ref_trilinear(lut, x))

    assert lut_out.shape == lut.shape
    assert out.shape == x.shape, out.shape
    np.testing.assert_allclose(np.asarray(out), np.asarray(ref),
                               atol=1e-4, rtol=1e-4)
    print("KERNEL_OK")
</pallas_src>

<mosaic_0001>
module attributes {stable_mosaic.version = 11 : i64} {
  func.func @_trilerp_kernel(%arg0: i32, %arg1: i32, %arg2: memref<27x81xf32, #tpu.memory_space<vmem>>, %arg3: memref<1x3x256xf32, #tpu.memory_space<vmem>>, %arg4: memref<1x3x256xf32, #tpu.memory_space<vmem>>) attributes {dimension_semantics = [#tpu.dimension_semantics<parallel>, #tpu.dimension_semantics<parallel>], iteration_bounds = array<i64: 2, 1>, scalar_prefetch = 0 : i64, scratch_operands = 0 : i64, tpu.core_type = #tpu.core_type<tc>, window_params = [{pipeline_mode = #tpu.pipeline_mode<synchronous>, transform_indices = @transform_0, window_bounds = array<i64: 27, 81>}, {transform_indices = @transform_1, window_bounds = array<i64: 1, 3, 256>}, {transform_indices = @transform_2, window_bounds = array<i64: 1, 3, 256>}]} {
    %c0 = arith.constant 0 : index
    %c0_0 = arith.constant 0 : index
    %c0_1 = arith.constant 0 : index
    %0 = vector.load %arg3[%c0, %c0_0, %c0_1] : memref<1x3x256xf32, #tpu.memory_space<vmem>>, vector<1x3x256xf32>
    %1 = vector.shape_cast %0 : vector<1x3x256xf32> to vector<3x256xf32>
    %cst = arith.constant 7.99999189 : f32
    %2 = vector.broadcast %cst : f32 to vector<3x256xf32>
    %3 = arith.mulf %1, %2 : vector<3x256xf32>
    %4 = math.floor %3 : vector<3x256xf32>
    %5 = arith.subf %3, %4 : vector<3x256xf32>
    %6 = arith.fptosi %4 : vector<3x256xf32> to vector<3x256xi32>
    %7 = vector.extract_strided_slice %6 {offsets = [0, 0], sizes = [1, 256], strides = [1, 1]} : vector<3x256xi32> to vector<1x256xi32>
    %8 = vector.extract_strided_slice %6 {offsets = [1, 0], sizes = [1, 256], strides = [1, 1]} : vector<3x256xi32> to vector<1x256xi32>
    %9 = vector.extract_strided_slice %6 {offsets = [2, 0], sizes = [1, 256], strides = [1, 1]} : vector<3x256xi32> to vector<1x256xi32>
    %10 = vector.extract_strided_slice %5 {offsets = [0, 0], sizes = [1, 256], strides = [1, 1]} : vector<3x256xf32> to vector<1x256xf32>
    %11 = vector.extract_strided_slice %5 {offsets = [1, 0], sizes = [1, 256], strides = [1, 1]} : vector<3x256xf32> to vector<1x256xf32>
    %12 = vector.extract_strided_slice %5 {offsets = [2, 0], sizes = [1, 256], strides = [1, 1]} : vector<3x256xf32> to vector<1x256xf32>
    %c9_i32 = arith.constant 9 : i32
    %13 = vector.broadcast %c9_i32 : i32 to vector<1x256xi32>
    %14 = arith.muli %9, %13 : vector<1x256xi32>
    %15 = arith.addi %14, %8 : vector<1x256xi32>
    %16 = tpu.iota {dimensions = array<i32: 0>} : vector<81x256xi32>
    %17 = vector.broadcast %15 : vector<1x256xi32> to vector<81x256xi32>
    %18 = arith.cmpi eq, %16, %17 : vector<81x256xi32>
    %cst_2 = arith.constant 1.000000e+00 : f32
    %19 = vector.broadcast %cst_2 : f32 to vector<1x256xf32>
    %20 = arith.subf %19, %12 : vector<1x256xf32>
    %cst_3 = arith.constant 1.000000e+00 : f32
    %21 = vector.broadcast %cst_3 : f32 to vector<1x256xf32>
    %22 = arith.subf %21, %11 : vector<1x256xf32>
    %23 = arith.mulf %20, %22 : vector<1x256xf32>
    %cst_4 = arith.constant 0.000000e+00 : f32
    %24 = vector.shape_cast %23 : vector<1x256xf32> to vector<1x256xf32>
    %25 = vector.broadcast %24 : vector<1x256xf32> to vector<81x256xf32>
    %26 = vector.broadcast %cst_4 : f32 to vector<81x256xf32>
    %27 = arith.select %18, %25, %26 : vector<81x256xi1>, vector<81x256xf32>
    %c1_i32 = arith.constant 1 : i32
    %28 = vector.broadcast %c1_i32 : i32 to vector<1x256xi32>
    %29 = arith.addi %15, %28 : vector<1x256xi32>
    %30 = vector.broadcast %29 : vector<1x256xi32> to vector<81x256xi32>
    %31 = arith.cmpi eq, %16, %30 : vector<81x256xi32>
    %cst_5 = arith.constant 1.000000e+00 : f32
    %32 = vector.broadcast %cst_5 : f32 to vector<1x256xf32>
    %33 = arith.subf %32, %12 : vector<1x256xf32>
    %34 = arith.mulf %33, %11 : vector<1x256xf32>
    %cst_6 = arith.constant 0.000000e+00 : f32
    %35 = vector.shape_cast %34 : vector<1x256xf32> to vector<1x256xf32>
    %36 = vector.broadcast %35 : vector<1x256xf32> to vector<81x256xf32>
    %37 = vector.broadcast %cst_6 : f32 to vector<81x256xf32>
    %38 = arith.select %31, %36, %37 : vector<81x256xi1>, vector<81x256xf32>
    %39 = arith.addf %27, %38 : vector<81x256xf32>
    %c9_i32_7 = arith.constant 9 : i32
    %40 = vector.broadcast %c9_i32_7 : i32 to vector<1x256xi32>
    %41 = arith.addi %15, %40 : vector<1x256xi32>
    %42 = vector.broadcast %41 : vector<1x256xi32> to vector<81x256xi32>
    %43 = arith.cmpi eq, %16, %42 : vector<81x256xi32>
    %cst_8 = arith.constant 1.000000e+00 : f32
    %44 = vector.broadcast %cst_8 : f32 to vector<1x256xf32>
    %45 = arith.subf %44, %11 : vector<1x256xf32>
    %46 = arith.mulf %12, %45 : vector<1x256xf32>
    %cst_9 = arith.constant 0.000000e+00 : f32
    %47 = vector.shape_cast %46 : vector<1x256xf32> to vector<1x256xf32>
    %48 = vector.broadcast %47 : vector<1x256xf32> to vector<81x256xf32>
    %49 = vector.broadcast %cst_9 : f32 to vector<81x256xf32>
    %50 = arith.select %43, %48, %49 : vector<81x256xi1>, vector<81x256xf32>
    %51 = arith.addf %39, %50 : vector<81x256xf32>
    %c9_i32_10 = arith.constant 9 : i32
    %52 = vector.broadcast %c9_i32_10 : i32 to vector<1x256xi32>
    %53 = arith.addi %15, %52 : vector<1x256xi32>
    %c1_i32_11 = arith.constant 1 : i32
    %54 = vector.broadcast %c1_i32_11 : i32 to vector<1x256xi32>
    %55 = arith.addi %53, %54 : vector<1x256xi32>
    %56 = vector.broadcast %55 : vector<1x256xi32> to vector<81x256xi32>
    %57 = arith.cmpi eq, %16, %56 : vector<81x256xi32>
    %58 = arith.mulf %12, %11 : vector<1x256xf32>
    %cst_12 = arith.constant 0.000000e+00 : f32
    %59 = vector.shape_cast %58 : vector<1x256xf32> to vector<1x256xf32>
    %60 = vector.broadcast %59 : vector<1x256xf32> to vector<81x256xf32>
    %61 = vector.broadcast %cst_12 : f32 to vector<81x256xf32>
    %62 = arith.select %57, %60, %61 : vector<81x256xi1>, vector<81x256xf32>
    %63 = arith.addf %51, %62 : vector<81x256xf32>
    %c0_13 = arith.constant 0 : index
    %c0_14 = arith.constant 0 : index
    %64 = vector.load %arg2[%c0_13, %c0_14] : memref<27x81xf32, #tpu.memory_space<vmem>>, vector<27x81xf32>
    %cst_15 = arith.constant dense<0.000000e+00> : vector<27x256xf32>
    %65 = tpu.matmul %64, %63, %cst_15 {dimension_numbers = #tpu.dot_dimension_numbers<[1], [0], [0], [1], [0, 0, 1, 1], [], []>, precision = #tpu.contract_precision<fp32>} : vector<27x81xf32>, vector<81x256xf32>, vector<27x256xf32> -> vector<27x256xf32>
    %66 = tpu.iota {dimensions = array<i32: 0>} : vector<9x256xi32>
    %67 = vector.broadcast %7 : vector<1x256xi32> to vector<9x256xi32>
    %68 = arith.cmpi eq, %66, %67 : vector<9x256xi32>
    %cst_16 = arith.constant 1.000000e+00 : f32
    %69 = vector.broadcast %cst_16 : f32 to vector<1x256xf32>
    %70 = arith.subf %69, %10 : vector<1x256xf32>
    %cst_17 = arith.constant 0.000000e+00 : f32
    %71 = vector.shape_cast %70 : vector<1x256xf32> to vector<1x256xf32>
    %72 = vector.broadcast %71 : vector<1x256xf32> to vector<9x256xf32>
    %73 = vector.broadcast %cst_17 : f32 to vector<9x256xf32>
    %74 = arith.select %68, %72, %73 : vector<9x256xi1>, vector<9x256xf32>
    %c1_i32_18 = arith.constant 1 : i32
    %75 = vector.broadcast %c1_i32_18 : i32 to vector<1x256xi32>
    %76 = arith.addi %7, %75 : vector<1x256xi32>
    %77 = vector.broadcast %76 : vector<1x256xi32> to vector<9x256xi32>
    %78 = arith.cmpi eq, %66, %77 : vector<9x256xi32>
    %cst_19 = arith.constant 0.000000e+00 : f32
    %79 = vector.shape_cast %10 : vector<1x256xf32> to vector<1x256xf32>
    %80 = vector.broadcast %79 : vector<1x256xf32> to vector<9x256xf32>
    %81 = vector.broadcast %cst_19 : f32 to vector<9x256xf32>
    %82 = arith.select %78, %80, %81 : vector<9x256xi1>, vector<9x256xf32>
    %83 = arith.addf %74, %82 : vector<9x256xf32>
    %84 = vector.extract_strided_slice %65 {offsets = [0, 0], sizes = [9, 256], strides = [1, 1]} : vector<27x256xf32> to vector<9x256xf32>
    %85 = arith.mulf %84, %83 : vector<9x256xf32>
    %cst_20 = arith.constant dense<0.000000e+00> : vector<256xf32>
    %86 = vector.multi_reduction <add>, %85, %cst_20 [0] : vector<9x256xf32> to vector<256xf32>
    %87 = vector.shape_cast %86 : vector<256xf32> to vector<1x256xf32>
    %88 = vector.extract_strided_slice %65 {offsets = [9, 0], sizes = [9, 256], strides = [1, 1]} : vector<27x256xf32> to vector<9x256xf32>
    %89 = arith.mulf %88, %83 : vector<9x256xf32>
    %cst_21 = arith.constant dense<0.000000e+00> : vector<256xf32>
    %90 = vector.multi_reduction <add>, %89, %cst_21 [0] : vector<9x256xf32> to vector<256xf32>
    %91 = vector.shape_cast %90 : vector<256xf32> to vector<1x256xf32>
    %92 = vector.extract_strided_slice %65 {offsets = [18, 0], sizes = [9, 256], strides = [1, 1]} : vector<27x256xf32> to vector<9x256xf32>
    %93 = arith.mulf %92, %83 : vector<9x256xf32>
    %cst_22 = arith.constant dense<0.000000e+00> : vector<256xf32>
    %94 = vector.multi_reduction <add>, %93, %cst_22 [0] : vector<9x256xf32> to vector<256xf32>
    %95 = vector.shape_cast %94 : vector<256xf32> to vector<1x256xf32>
    %96 = tpu.concatenate %87, %91, %95 in 0 : vector<1x256xf32>, vector<1x256xf32>, vector<1x256xf32> -> vector<3x256xf32>
    %c0_23 = arith.constant 0 : index
    %c0_24 = arith.constant 0 : index
    %c0_25 = arith.constant 0 : index
    %97 = vector.load %arg4[%c0_23, %c0_24, %c0_25] : memref<1x3x256xf32, #tpu.memory_space<vmem>>, vector<1x3x256xf32>
    %98 = vector.shape_cast %97 : vector<1x3x256xf32> to vector<3x256xf32>
    %99 = vector.shape_cast %96 : vector<3x256xf32> to vector<1x3x256xf32>
    tpu.vector_store %arg4[%c0_23, %c0_24, %c0_25], %99 {strides = array<i32>} : memref<1x3x256xf32, #tpu.memory_space<vmem>>, vector<1x3x256xf32>,
    return
  }
  func.func @transform_0(%arg0: i32, %arg1: i32) -> (i32, i32) {
    %c0_i32 = arith.constant 0 : i32
    %c0_i32_0 = arith.constant 0 : i32
    %c0_i32_1 = arith.constant 0 : i32
    return %c0_i32, %c0_i32_0 : i32, i32
  }
  func.func @transform_1(%arg0: i32, %arg1: i32) -> (i32, i32, i32) {
    %c0_i32 = arith.constant 0 : i32
    %c0_i32_0 = arith.constant 0 : i32
    return %arg0, %c0_i32, %arg1 : i32, i32, i32
  }
  func.func @transform_2(%arg0: i32, %arg1: i32) -> (i32, i32, i32) {
    %c0_i32 = arith.constant 0 : i32
    %c0_i32_0 = arith.constant 0 : i32
    return %arg0, %c0_i32, %arg1 : i32, i32, i32
  }
}

</mosaic_0001>

<llo_original>
// kernel: tpu_custom_call.1
$region0: #{tpu_custom_call.1}
  #allocation0 [shape = 'u32[]', space=smem, size = 0x4, offset = 0x4, fixed_abs, tag = 'smem constant byte address 0x4 - core index']
  #allocation1 [shape = 'u32[144,128]{1,0:T(1,128)}', space=vmem, size = 0x12000, scoped, tag = 'internal scratch']
  %s0 = inlined_call_operand.hbm [shape: f32[27,81], index: 0, kind: input, shape index: {}]
  %s1 = inlined_call_operand.vmem [shape: f32[2,3,256], index: 1, kind: input, shape index: {}]
  %s2 = inlined_call_operand.vmem [shape: f32[2,3,256], index: 2, kind: output, shape index: {}]
  %s3 = sld [smem:[#allocation0]]
  $region45: #{tpu_custom_call.1} parent=0
    _
  %s5 = ssub.s32 1, %s3
  %s6 = scalar_select 0, %s5, %s3
  $region1: #{tpu_custom_call.1} parent=0
    #allocation2 [shape = 'u8[16384]{0}', space=vmem, size = 0x4000, scoped, tag = 'input window, operand 0, single buffered']
    #allocation3 [shape = 's32[2]{0}', space=sflag, size = 0x8, scoped, tag = 'scoped memory for tpu_custom_call.1']
    %7 = vsyncpa [#allocation3], 0
    loop: start=0, step=1, limit=4
    $region2: #{tpu_custom_call.1} parent=1 // loop_pre_header
      _
    $region3: #{tpu_custom_call.1} parent=1 // loop_header
      %s9 = sphi 0, %s13
      %p10 = scmp.ge.s32.totalorder %s9, 4
      %s16 = sphi 0, %s28
      %s17 = sphi 0, %s24
      %s18 = sphi 0, %s16
      %s19 = sphi 0, %s17
      %s20 = sphi 0, %s18
      %s21 = sphi 0, %s19
      %s29 = sphi 0, %s29
      %s31 = sphi 0, %s29
      %s32 = sphi 0, %s31
      %s46 = sphi 0, %s32
      %s54 = sphi 0, %s56
      %s57 = sphi 0, %s54
      %s58 = sphi 0, %s57
      %s74 = sphi 0, %s58
      %s82 = sphi 0, %s84
      %s85 = sphi 0, %s82
      %s86 = sphi 0, %s85
      %s102 = sphi 0, %s86
    $region4: #{tpu_custom_call.1} parent=1 // loop_header_branch
      %12 = sbr.rel (%p10) target = $region8
    $region5: #{tpu_custom_call.1} parent=1 // loop_body
      %s14 = ssub.s32 %s9, 1
      %s15 = ssub.s32 %s9, 2
      %s22 = sadd.s32 1, %s17
      %p23 = scmp.ge.s32.totalorder %s22, 1
      %s24 = scalar_select %p23, 0, %s22
      %s25 = sadd.s32 1, %s16
      %s26 = scalar_select %p23, %s25, %s16
      %p27 = scmp.ge.s32.totalorder %s26, 2
      %s28 = scalar_select %p27, 0, %s26
      %s30 = sadd.s32 %s29, 1
      %p33 = scmp.eq.s32.totalorder %s9, 1
      %p34 = scmp.ne.s32.totalorder %s29, %s31
      %p35 = scmp.eq.s32.totalorder %s9, 0
      %p36 = por %p34, %p35
      %p37 = scmp.ne.s32.totalorder %s29, %s31
      %p38 = scmp.eq.s32.totalorder %s14, 1
      %p39 = por %p37, %p38
      %p40 = scmp.ne.s32.totalorder %s31, %s32
      %p41 = scmp.eq.s32.totalorder %s14, 0
      %p42 = por %p40, %p41
      %p43 = scmp.ne.s32.totalorder %s31, %s32
      %p44 = scmp.eq.s32.totalorder %s15, 1
      %p45 = por %p43, %p44
      %p47 = scmp.ne.s32.totalorder %s32, %s46
      %p48 = scmp.eq.s32.totalorder %s15, 0
      %p49 = por %p47, %p48
      %s50 = ssub.s32 %s16, %s28
      %s51 = ssub.s32 %s17, %s24
      %s52 = sor.u32 %s50, %s51
      %p53 = scmp.eq.s32.totalorder %s52, 0
      %s55 = sadd.s32 %s54, 1
      %s56 = scalar_select %p53, %s54, %s55
      %p59 = pneg %p53
      %p60 = scmp.eq.s32.totalorder %s9, 1
      %p61 = por %p59, %p60
      %p62 = scmp.ne.s32.totalorder %s54, %s57
      %p63 = scmp.eq.s32.totalorder %s9, 0
      %p64 = por %p62, %p63
      %p65 = scmp.ne.s32.totalorder %s54, %s57
      %p66 = scmp.eq.s32.totalorder %s14, 1
      %p67 = por %p65, %p66
      %p68 = scmp.ne.s32.totalorder %s57, %s58
      %p69 = scmp.eq.s32.totalorder %s14, 0
      %p70 = por %p68, %p69
      %p71 = scmp.ne.s32.totalorder %s57, %s58
      %p72 = scmp.eq.s32.totalorder %s15, 1
      %p73 = por %p71, %p72
      %p75 = scmp.ne.s32.totalorder %s58, %s74
      %p76 = scmp.eq.s32.totalorder %s15, 0
      %p77 = por %p75, %p76
      %s78 = ssub.s32 %s16, %s28
      %s79 = ssub.s32 %s17, %s24
      %s80 = sor.u32 %s78, %s79
      %p81 = scmp.eq.s32.totalorder %s80, 0
      %s83 = sadd.s32 %s82, 1
      %s84 = scalar_select %p81, %s82, %s83
      %p87 = pneg %p81
      %p88 = scmp.eq.s32.totalorder %s9, 1
      %p89 = por %p87, %p88
      %p90 = scmp.ne.s32.totalorder %s82, %s85
      %p91 = scmp.eq.s32.totalorder %s9, 0
      %p92 = por %p90, %p91
      %p93 = scmp.ne.s32.totalorder %s82, %s85
      %p94 = scmp.eq.s32.totalorder %s14, 1
      %p95 = por %p93, %p94
      %p96 = scmp.ne.s32.totalorder %s85, %s86
      %p97 = scmp.eq.s32.totalorder %s14, 0
      %p98 = por %p96, %p97
      %p99 = scmp.ne.s32.totalorder %s85, %s86
      %p100 = scmp.eq.s32.totalorder %s15, 1
      %p101 = por %p99, %p100
      %p103 = scmp.ne.s32.totalorder %s86, %s102
      %p104 = scmp.eq.s32.totalorder %s15, 0
      %p105 = por %p103, %p104
      %p106 = scmp.le.s32.totalorder 1, %s9
      %p107 = scmp.lt.s32.totalorder %s9, 3
      %p108 = pnand %p106, %p107
      %p109 = pneg %p108
      // Predicated region
      $region9: #{tpu_custom_call.1} parent=5 // pred_check
        _
      $region10: #{tpu_custom_call.1} parent=5 // pred_check_branch
        %111 = sbr.rel (%p108) target = $region12
      $region11: #{tpu_custom_call.1} parent=5 // pred_region
        %s112 = ssub.s32 %s9, 1
        // Predicated region
        $region13: #{tpu_custom_call.1} parent=11 // pred_check
          %p113 = pneg %p42
        $region14: #{tpu_custom_call.1} parent=11 // pred_check_branch
          %115 = sbr.rel (%p113) target = $region16
        $region15: #{tpu_custom_call.1} parent=11 // pred_region
          %s117 = ssub.s32 512, 512
          %118 = vsyncadd [#allocation3], %s117
          %s119 = sshll.u32 [#allocation2], 4
          %s120 = int_to_ptr.vmem [resolvable:$true] %s119
          %125 = dma.hbm_to_vmem [thread:$0]  %s0, 512, %s120, [#allocation3], 128, 128, 8
        $region16: #{tpu_custom_call.1} parent=11 // pred_fallthru
          _
      $region12: #{tpu_custom_call.1} parent=5 // pred_fallthru
        _
      %p126 = scmp.lt.s32.totalorder %s9, 2
      // Predicated region
      $region17: #{tpu_custom_call.1} parent=5 // pred_check
        %p127 = pneg %p126
      $region18: #{tpu_custom_call.1} parent=5 // pred_check_branch
        %129 = sbr.rel (%p127) target = $region20
      $region19: #{tpu_custom_call.1} parent=5 // pred_region
        // Predicated region
        $region21: #{tpu_custom_call.1} parent=19 // pred_check
          %p130 = pneg %p64
        $region22: #{tpu_custom_call.1} parent=19 // pred_check_branch
          %132 = sbr.rel (%p130) target = $region24
        $region23: #{tpu_custom_call.1} parent=19 // pred_region
          %s133 = smul.u32 2, %s17
          %p134 = scmp.lt.s32.totalorder %s16, 1
          %s135 = scalar_select %p134, %s16, 1
          %p136 = scmp.lt.s32.totalorder %s133, 1
          %s137 = scalar_select %p136, %s133, 1
          %s138 = smul.addr %s135, 2
          %s139 = sadd.s32 %s137, %s138
          %s140 = smul.addr %s139, 4
          %s141 = scalar_lea.vmem %s1, %s140
          %s142 = smul.u32 2, %s17
        $region24: #{tpu_custom_call.1} parent=19 // pred_fallthru
          _
      $region20: #{tpu_custom_call.1} parent=5 // pred_fallthru
        _
      %p143 = scmp.le.s32.totalorder 1, %s9
      %p144 = scmp.lt.s32.totalorder %s9, 3
      %p145 = pnand %p143, %p144
      %p146 = pneg %p145
      // Predicated region
      $region25: #{tpu_custom_call.1} parent=5 // pred_check
        _
      $region26: #{tpu_custom_call.1} parent=5 // pred_check_branch
        %148 = sbr.rel (%p145) target = $region28
      $region27: #{tpu_custom_call.1} parent=5 // pred_region
        %s149 = ssub.s32 %s9, 1
        // Predicated region
        $region29: #{tpu_custom_call.1} parent=27 // pred_check
          %p150 = pneg %p42
        $region30: #{tpu_custom_call.1} parent=27 // pred_check_branch
          %152 = sbr.rel (%p150) target = $region32
        $region31: #{tpu_custom_call.1} parent=27 // pred_region
          %153 = dma.done [#allocation3], 512
        $region32: #{tpu_custom_call.1} parent=27 // pred_fallthru
          _
        %p154 = pneg %p42
        %p155 = pneg %p39
        %s156 = smul.u32 2, %s19
        %p157 = scmp.lt.s32.totalorder %s18, 1
        %s158 = scalar_select %p157, %s18, 1
        %p159 = scmp.lt.s32.totalorder %s156, 1
        %s160 = scalar_select %p159, %s156, 1
        %s161 = smul.addr %s158, 2
        %s162 = sadd.s32 %s160, %s161
        %s163 = smul.addr %s162, 4
        %s164 = scalar_lea.vmem %s1, %s163
        %p165 = pneg %p70
        %p166 = pneg %p67
        %p167 = pneg %p98
        %p168 = pneg %p95
        %s169 = smul.u32 2, %s19
        %p170 = scmp.lt.s32.totalorder %s18, 1
        %s171 = scalar_select %p170, %s18, 1
        %p172 = scmp.lt.s32.totalorder %s169, 1
        %s173 = scalar_select %p172, %s169, 1
        %s174 = smul.addr %s171, 2
        %s175 = sadd.s32 %s173, %s174
        %s176 = smul.addr %s175, 4
        %s177 = scalar_lea.vmem %s2, %s176
        %s178 = smul.u32 2, %s19
        %p179 = scmp.lt.s32.totalorder %s18, 1
        %s180 = scalar_select %p179, %s18, 1
        %p181 = scmp.lt.s32.totalorder %s178, 1
        %s182 = scalar_select %p181, %s178, 1
        %s183 = smul.addr %s180, 2
        %s184 = sadd.s32 %s182, %s183
        %s185 = smul.addr %s184, 4
        %s186 = scalar_lea.vmem %s1, %s185
        %s187 = smul.u32 2, %s19
        %s188 = smul.u32 2, %s19
        %p189 = scmp.lt.s32.totalorder %s18, 1
        %s190 = scalar_select %p189, %s18, 1
        %p191 = scmp.lt.s32.totalorder %s188, 1
        %s192 = scalar_select %p191, %s188, 1
        %s193 = smul.addr %s190, 2
        %s194 = sadd.s32 %s192, %s193
        %s195 = smul.addr %s194, 4
        %s196 = scalar_lea.vmem %s2, %s195
        %s197 = smul.u32 2, %s19
        %v198 = vld [vmem:[%s186] sm:$0x77]
        %v199 = vmul.f32 %v198, 7.999992
        %v200 = vfloor.f32 %v199
        %v201 = vsub.f32 %v199, %v200
        %v202 = vcvt.f32.s32.to.zero.pseudo %v200
        %v203 = vmul.u32 %v202, 9
        %v204 = vrot.slane %v202, 7
        %v205 = vadd.s32 %v203, %v204
        %v206 = vlaneseq
        %v207 = vshrl.u32 %v206, 7
        %v208 = vadd.s32 %v207, 8
        %v209 = vadd.s32 %v207, 16
        %v210 = vadd.s32 %v207, 24
        %v211 = vadd.s32 %v207, 32
        %v212 = vadd.s32 %v207, 40
        %v213 = vadd.s32 %v207, 48
        %v214 = vadd.s32 %v207, 56
        %v215 = vadd.s32 %v207, 64
        %v216 = vadd.s32 %v207, 72
        %v217 = vadd.s32 %v207, 80
        %v218 = vlaneseq
        %v219 = vshrl.u32 %v218, 7
        %v220 = vsub.s32 2, %v219
        %v221 = vrot.slane %v205, %v220
        %v222 = vlaneseq
        %v223 = vshrl.u32 %v222, 7
        %v224 = vsub.s32 6, %v223
        %v225 = vrot.slane %v205, %v224
        %v226 = vlaneseq
        %v227 = vshrl.u32 %v226, 7
        %v228 = vsub.s32 2, %v227
        %v229 = vrot.slane %v221, %v228
        %v230 = vlaneseq
        %v231 = vshrl.u32 %v230, 7
        %v232 = vsub.s32 2, %v231
        %v233 = vrot.slane %v225, %v232
        %vm234 = vcmp.eq.s32.totalorder %v207, %v229
        %vm235 = vcmp.eq.s32.totalorder %v207, %v233
        %vm236 = vcmp.eq.s32.totalorder %v208, %v229
        %vm237 = vcmp.eq.s32.totalorder %v208, %v233
        %vm238 = vcmp.eq.s32.totalorder %v209, %v229
        %vm239 = vcmp.eq.s32.totalorder %v209, %v233
        %vm240 = vcmp.eq.s32.totalorder %v210, %v229
        %vm241 = vcmp.eq.s32.totalorder %v210, %v233
        %vm242 = vcmp.eq.s32.totalorder %v211, %v229
        %vm243 = vcmp.eq.s32.totalorder %v211, %v233
        %vm244 = vcmp.eq.s32.totalorder %v212, %v229
        %vm245 = vcmp.eq.s32.totalorder %v212, %v233
        %vm246 = vcmp.eq.s32.totalorder %v213, %v229
        %vm247 = vcmp.eq.s32.totalorder %v213, %v233
        %vm248 = vcmp.eq.s32.totalorder %v214, %v229
        %vm249 = vcmp.eq.s32.totalorder %v214, %v233
        %vm250 = vcmp.eq.s32.totalorder %v215, %v229
        %vm251 = vcmp.eq.s32.totalorder %v215, %v233
        %vm252 = vcmp.eq.s32.totalorder %v216, %v229
        %vm253 = vcmp.eq.s32.totalorder %v216, %v233
        %vm254 = vcmp.eq.s32.totalorder %v217, %v229
        %vm255 = vcmp.eq.s32.totalorder %v217, %v233
        %v256 = vsub.f32 1.0, %v201
        %v258 = vrot.slane %v256, 7
        %v260 = vmul.f32 %v256, %v258
        %v262 = vlaneseq
        %v263 = vshrl.u32 %v262, 7
        %v264 = vsub.s32 2, %v263
        %v265 = vrot.slane %v260, %v264
        %v266 = vlaneseq
        %v267 = vshrl.u32 %v266, 7
        %v268 = vsub.s32 6, %v267
        %v269 = vrot.slane %v260, %v268
        %v272 = vlaneseq
        %v273 = vshrl.u32 %v272, 7
        %v274 = vsub.s32 2, %v273
        %v275 = vrot.slane %v265, %v274
        %v276 = vlaneseq
        %v277 = vshrl.u32 %v276, 7
        %v278 = vsub.s32 2, %v277
        %v279 = vrot.slane %v269, %v278
        %v280 = vsel %vm234, %v275, 0.0
        %v281 = vsel %vm235, %v279, 0.0
        %v282 = vsel %vm236, %v275, 0.0
        %v283 = vsel %vm237, %v279, 0.0
        %v284 = vsel %vm238, %v275, 0.0
        %v285 = vsel %vm239, %v279, 0.0
        %v286 = vsel %vm240, %v275, 0.0
        %v287 = vsel %vm241, %v279, 0.0
        %v288 = vsel %vm242, %v275, 0.0
        %v289 = vsel %vm243, %v279, 0.0
        %v290 = vsel %vm244, %v275, 0.0
        %v291 = vsel %vm245, %v279, 0.0
        %v292 = vsel %vm246, %v275, 0.0
        %v293 = vsel %vm247, %v279, 0.0
        %v294 = vsel %vm248, %v275, 0.0
        %v295 = vsel %vm249, %v279, 0.0
        %v296 = vsel %vm250, %v275, 0.0
        %v297 = vsel %vm251, %v279, 0.0
        %v298 = vsel %vm252, %v275, 0.0
        %v299 = vsel %vm253, %v279, 0.0
        %v300 = vsel %vm254, %v275, 0.0
        %v301 = vsel %vm255, %v279, 0.0
        %v302 = vadd.s32 %v205, 1
        %v303 = vlaneseq
        %v304 = vshrl.u32 %v303, 7
        %v305 = vsub.s32 2, %v304
        %v306 = vrot.slane %v302, %v305
        %v307 = vlaneseq
        %v308 = vshrl.u32 %v307, 7
        %v309 = vsub.s32 6, %v308
        %v310 = vrot.slane %v302, %v309
        %v311 = vlaneseq
        %v312 = vshrl.u32 %v311, 7
        %v313 = vsub.s32 2, %v312
        %v314 = vrot.slane %v306, %v313
        %v315 = vlaneseq
        %v316 = vshrl.u32 %v315, 7
        %v317 = vsub.s32 2, %v316
        %v318 = vrot.slane %v310, %v317
        %vm319 = vcmp.eq.s32.totalorder %v207, %v314
        %vm320 = vcmp.eq.s32.totalorder %v207, %v318
        %vm321 = vcmp.eq.s32.totalorder %v208, %v314
        %vm322 = vcmp.eq.s32.totalorder %v208, %v318
        %vm323 = vcmp.eq.s32.totalorder %v209, %v314
        %vm324 = vcmp.eq.s32.totalorder %v209, %v318
        %vm325 = vcmp.eq.s32.totalorder %v210, %v314
        %vm326 = vcmp.eq.s32.totalorder %v210, %v318
        %vm327 = vcmp.eq.s32.totalorder %v211, %v314
        %vm328 = vcmp.eq.s32.totalorder %v211, %v318
        %vm329 = vcmp.eq.s32.totalorder %v212, %v314
        %vm330 = vcmp.eq.s32.totalorder %v212, %v318
        %vm331 = vcmp.eq.s32.totalorder %v213, %v314
        %vm332 = vcmp.eq.s32.totalorder %v213, %v318
        %vm333 = vcmp.eq.s32.totalorder %v214, %v314
        %vm334 = vcmp.eq.s32.totalorder %v214, %v318
        %vm335 = vcmp.eq.s32.totalorder %v215, %v314
        %vm336 = vcmp.eq.s32.totalorder %v215, %v318
        %vm337 = vcmp.eq.s32.totalorder %v216, %v314
        %vm338 = vcmp.eq.s32.totalorder %v216, %v318
        %vm339 = vcmp.eq.s32.totalorder %v217, %v314
        %vm340 = vcmp.eq.s32.totalorder %v217, %v318
        %v342 = vrot.slane %v201, 7
        %v344 = vmul.f32 %v256, %v342
        %v346 = vlaneseq
        %v347 = vshrl.u32 %v346, 7
        %v348 = vsub.s32 2, %v347
        %v349 = vrot.slane %v344, %v348
        %v350 = vlaneseq
        %v351 = vshrl.u32 %v350, 7
        %v352 = vsub.s32 6, %v351
        %v353 = vrot.slane %v344, %v352
        %v356 = vlaneseq
        %v357 = vshrl.u32 %v356, 7
        %v358 = vsub.s32 2, %v357
        %v359 = vrot.slane %v349, %v358
        %v360 = vlaneseq
        %v361 = vshrl.u32 %v360, 7
        %v362 = vsub.s32 2, %v361
        %v363 = vrot.slane %v353, %v362
        %v364 = vsel %vm319, %v359, 0.0
        %v365 = vsel %vm320, %v363, 0.0
        %v366 = vsel %vm321, %v359, 0.0
        %v367 = vsel %vm322, %v363, 0.0
        %v368 = vsel %vm323, %v359, 0.0
        %v369 = vsel %vm324, %v363, 0.0
        %v370 = vsel %vm325, %v359, 0.0
        %v371 = vsel %vm326, %v363, 0.0
        %v372 = vsel %vm327, %v359, 0.0
        %v373 = vsel %vm328, %v363, 0.0
        %v374 = vsel %vm329, %v359, 0.0
        %v375 = vsel %vm330, %v363, 0.0
        %v376 = vsel %vm331, %v359, 0.0
        %v377 = vsel %vm332, %v363, 0.0
        %v378 = vsel %vm333, %v359, 0.0
        %v379 = vsel %vm334, %v363, 0.0
        %v380 = vsel %vm335, %v359, 0.0
        %v381 = vsel %vm336, %v363, 0.0
        %v382 = vsel %vm337, %v359, 0.0
        %v383 = vsel %vm338, %v363, 0.0
        %v384 = vsel %vm339, %v359, 0.0
        %v385 = vsel %vm340, %v363, 0.0
        %v386 = vadd.f32 %v280, %v364
        %v387 = vadd.f32 %v281, %v365
        %v388 = vadd.f32 %v282, %v366
        %v389 = vadd.f32 %v283, %v367
        %v390 = vadd.f32 %v284, %v368
        %v391 = vadd.f32 %v285, %v369
        %v392 = vadd.f32 %v286, %v370
        %v393 = vadd.f32 %v287, %v371
        %v394 = vadd.f32 %v288, %v372
        %v395 = vadd.f32 %v289, %v373
        %v396 = vadd.f32 %v290, %v374
        %v397 = vadd.f32 %v291, %v375
        %v398 = vadd.f32 %v292, %v376
        %v399 = vadd.f32 %v293, %v377
        %v400 = vadd.f32 %v294, %v378
        %v401 = vadd.f32 %v295, %v379
        %v402 = vadd.f32 %v296, %v380
        %v403 = vadd.f32 %v297, %v381
        %v404 = vadd.f32 %v298, %v382
        %v405 = vadd.f32 %v299, %v383
        %v406 = vadd.f32 %v300, %v384
        %v407 = vadd.f32 %v301, %v385
        %v408 = vadd.s32 %v205, 9
        %v409 = vlaneseq
        %v410 = vshrl.u32 %v409, 7
        %v411 = vsub.s32 2, %v410
        %v412 = vrot.slane %v408, %v411
        %v413 = vlaneseq
        %v414 = vshrl.u32 %v413, 7
        %v415 = vsub.s32 6, %v414
        %v416 = vrot.slane %v408, %v415
        %v417 = vlaneseq
        %v418 = vshrl.u32 %v417, 7
        %v419 = vsub.s32 2, %v418
        %v420 = vrot.slane %v412, %v419
        %v421 = vlaneseq
        %v422 = vshrl.u32 %v421, 7
        %v423 = vsub.s32 2, %v422
        %v424 = vrot.slane %v416, %v423
        %vm425 = vcmp.eq.s32.totalorder %v207, %v420
        %vm426 = vcmp.eq.s32.totalorder %v207, %v424
        %vm427 = vcmp.eq.s32.totalorder %v208, %v420
        %vm428 = vcmp.eq.s32.totalorder %v208, %v424
        %vm429 = vcmp.eq.s32.totalorder %v209, %v420
        %vm430 = vcmp.eq.s32.totalorder %v209, %v424
        %vm431 = vcmp.eq.s32.totalorder %v210, %v420
        %vm432 = vcmp.eq.s32.totalorder %v210, %v424
        %vm433 = vcmp.eq.s32.totalorder %v211, %v420
        %vm434 = vcmp.eq.s32.totalorder %v211, %v424
        %vm435 = vcmp.eq.s32.totalorder %v212, %v420
        %vm436 = vcmp.eq.s32.totalorder %v212, %v424
        %vm437 = vcmp.eq.s32.totalorder %v213, %v420
        %vm438 = vcmp.eq.s32.totalorder %v213, %v424
        %vm439 = vcmp.eq.s32.totalorder %v214, %v420
        %vm440 = vcmp.eq.s32.totalorder %v214, %v424
        %vm441 = vcmp.eq.s32.totalorder %v215, %v420
        %vm442 = vcmp.eq.s32.totalorder %v215, %v424
        %vm443 = vcmp.eq.s32.totalorder %v216, %v420
        %vm444 = vcmp.eq.s32.totalorder %v216, %v424
        %vm445 = vcmp.eq.s32.totalorder %v217, %v420
        %vm446 = vcmp.eq.s32.totalorder %v217, %v424
        %v447 = vmul.f32 %v201, %v258
        %v449 = vlaneseq
        %v450 = vshrl.u32 %v449, 7
        %v451 = vsub.s32 2, %v450
        %v452 = vrot.slane %v447, %v451
        %v453 = vlaneseq
        %v454 = vshrl.u32 %v453, 7
        %v455 = vsub.s32 6, %v454
        %v456 = vrot.slane %v447, %v455
        %v459 = vlaneseq
        %v460 = vshrl.u32 %v459, 7
        %v461 = vsub.s32 2, %v460
        %v462 = vrot.slane %v452, %v461
        %v463 = vlaneseq
        %v464 = vshrl.u32 %v463, 7
        %v465 = vsub.s32 2, %v464
        %v466 = vrot.slane %v456, %v465
        %v467 = vsel %vm425, %v462, 0.0
        %v468 = vsel %vm426, %v466, 0.0
        %v469 = vsel %vm427, %v462, 0.0
        %v470 = vsel %vm428, %v466, 0.0
        %v471 = vsel %vm429, %v462, 0.0
        %v472 = vsel %vm430, %v466, 0.0
        %v473 = vsel %vm431, %v462, 0.0
        %v474 = vsel %vm432, %v466, 0.0
        %v475 = vsel %vm433, %v462, 0.0
        %v476 = vsel %vm434, %v466, 0.0
        %v477 = vsel %vm435, %v462, 0.0
        %v478 = vsel %vm436, %v466, 0.0
        %v479 = vsel %vm437, %v462, 0.0
        %v480 = vsel %vm438, %v466, 0.0
        %v481 = vsel %vm439, %v462, 0.0
        %v482 = vsel %vm440, %v466, 0.0
        %v483 = vsel %vm441, %v462, 0.0
        %v484 = vsel %vm442, %v466, 0.0
        %v485 = vsel %vm443, %v462, 0.0
        %v486 = vsel %vm444, %v466, 0.0
        %v487 = vsel %vm445, %v462, 0.0
        %v488 = vsel %vm446, %v466, 0.0
        %v489 = vadd.f32 %v386, %v467
        %v490 = vadd.f32 %v387, %v468
        %v491 = vadd.f32 %v388, %v469
        %v492 = vadd.f32 %v389, %v470
        %v493 = vadd.f32 %v390, %v471
        %v494 = vadd.f32 %v391, %v472
        %v495 = vadd.f32 %v392, %v473
        %v496 = vadd.f32 %v393, %v474
        %v497 = vadd.f32 %v394, %v475
        %v498 = vadd.f32 %v395, %v476
        %v499 = vadd.f32 %v396, %v477
        %v500 = vadd.f32 %v397, %v478
        %v501 = vadd.f32 %v398, %v479
        %v502 = vadd.f32 %v399, %v480
        %v503 = vadd.f32 %v400, %v481
        %v504 = vadd.f32 %v401, %v482
        %v505 = vadd.f32 %v402, %v483
        %v506 = vadd.f32 %v403, %v484
        %v507 = vadd.f32 %v404, %v485
        %v508 = vadd.f32 %v405, %v486
        %v509 = vadd.f32 %v406, %v487
        %v510 = vadd.f32 %v407, %v488
        %v511 = vadd.s32 %v408, 1
        %v512 = vlaneseq
        %v513 = vshrl.u32 %v512, 7
        %v514 = vsub.s32 2, %v513
        %v515 = vrot.slane %v511, %v514
        %v516 = vlaneseq
        %v517 = vshrl.u32 %v516, 7
        %v518 = vsub.s32 6, %v517
        %v519 = vrot.slane %v511, %v518
        %v520 = vlaneseq
        %v521 = vshrl.u32 %v520, 7
        %v522 = vsub.s32 2, %v521
        %v523 = vrot.slane %v515, %v522
        %v524 = vlaneseq
        %v525 = vshrl.u32 %v524, 7
        %v526 = vsub.s32 2, %v525
        %v527 = vrot.slane %v519, %v526
        %vm528 = vcmp.eq.s32.totalorder %v207, %v523
        %vm529 = vcmp.eq.s32.totalorder %v207, %v527
        %vm530 = vcmp.eq.s32.totalorder %v208, %v523
        %vm531 = vcmp.eq.s32.totalorder %v208, %v527
        %vm532 = vcmp.eq.s32.totalorder %v209, %v523
        %vm533 = vcmp.eq.s32.totalorder %v209, %v527
        %vm534 = vcmp.eq.s32.totalorder %v210, %v523
        %vm535 = vcmp.eq.s32.totalorder %v210, %v527
        %vm536 = vcmp.eq.s32.totalorder %v211, %v523
        %vm537 = vcmp.eq.s32.totalorder %v211, %v527
        %vm538 = vcmp.eq.s32.totalorder %v212, %v523
        %vm539 = vcmp.eq.s32.totalorder %v212, %v527
        %vm540 = vcmp.eq.s32.totalorder %v213, %v523
        %vm541 = vcmp.eq.s32.totalorder %v213, %v527
        %vm542 = vcmp.eq.s32.totalorder %v214, %v523
        %vm543 = vcmp.eq.s32.totalorder %v214, %v527
        %vm544 = vcmp.eq.s32.totalorder %v215, %v523
        %vm545 = vcmp.eq.s32.totalorder %v215, %v527
        %vm546 = vcmp.eq.s32.totalorder %v216, %v523
        %vm547 = vcmp.eq.s32.totalorder %v216, %v527
        %vm548 = vcmp.eq.s32.totalorder %v217, %v523
        %vm549 = vcmp.eq.s32.totalorder %v217, %v527
        %v550 = vmul.f32 %v201, %v342
        %v552 = vlaneseq
        %v553 = vshrl.u32 %v552, 7
        %v554 = vsub.s32 2, %v553
        %v555 = vrot.slane %v550, %v554
        %v556 = vlaneseq
        %v557 = vshrl.u32 %v556, 7
        %v558 = vsub.s32 6, %v557
        %v559 = vrot.slane %v550, %v558
        %v562 = vlaneseq
        %v563 = vshrl.u32 %v562, 7
        %v564 = vsub.s32 2, %v563
        %v565 = vrot.slane %v555, %v564
        %v566 = vlaneseq
        %v567 = vshrl.u32 %v566, 7
        %v568 = vsub.s32 2, %v567
        %v569 = vrot.slane %v559, %v568
        %v570 = vsel %vm528, %v565, 0.0
        %v571 = vsel %vm529, %v569, 0.0
        %v572 = vsel %vm530, %v565, 0.0
        %v573 = vsel %vm531, %v569, 0.0
        %v574 = vsel %vm532, %v565, 0.0
        %v575 = vsel %vm533, %v569, 0.0
        %v576 = vsel %vm534, %v565, 0.0
        %v577 = vsel %vm535, %v569, 0.0
        %v578 = vsel %vm536, %v565, 0.0
        %v579 = vsel %vm537, %v569, 0.0
        %v580 = vsel %vm538, %v565, 0.0
        %v581 = vsel %vm539, %v569, 0.0
        %v582 = vsel %vm540, %v565, 0.0
        %v583 = vsel %vm541, %v569, 0.0
        %v584 = vsel %vm542, %v565, 0.0
        %v585 = vsel %vm543, %v569, 0.0
        %v586 = vsel %vm544, %v565, 0.0
        %v587 = vsel %vm545, %v569, 0.0
        %v588 = vsel %vm546, %v565, 0.0
        %v589 = vsel %vm547, %v569, 0.0
        %v590 = vsel %vm548, %v565, 0.0
        %v591 = vsel %vm549, %v569, 0.0
        %v592 = vadd.f32 %v489, %v570
        %v593 = vadd.f32 %v490, %v571
        %v594 = vadd.f32 %v491, %v572
        %v595 = vadd.f32 %v492, %v573
        %v596 = vadd.f32 %v493, %v574
        %v597 = vadd.f32 %v494, %v575
        %v598 = vadd.f32 %v495, %v576
        %v599 = vadd.f32 %v496, %v577
        %v600 = vadd.f32 %v497, %v578
        %v601 = vadd.f32 %v498, %v579
        %v602 = vadd.f32 %v499, %v580
        %v603 = vadd.f32 %v500, %v581
        %v604 = vadd.f32 %v501, %v582
        %v605 = vadd.f32 %v502, %v583
        %v606 = vadd.f32 %v503, %v584
        %v607 = vadd.f32 %v504, %v585
        %v608 = vadd.f32 %v505, %v586
        %v609 = vadd.f32 %v506, %v587
        %v610 = vadd.f32 %v507, %v588
        %v611 = vadd.f32 %v508, %v589
        %v612 = vadd.f32 %v509, %v590
        %v613 = vadd.f32 %v510, %v591
        %v614 = vld [vmem:[#allocation2] sm:$0xff]
        %v615 = vld [vmem:[#allocation2 + $0x8] sm:$0xff]
        %v616 = vld [vmem:[#allocation2 + $0x10] sm:$0xff]
        %v617 = vld [vmem:[#allocation2 + $0x18] sm:$0x7]
        %vm618 = vcmask 662528
        %v620 = vsel %vm618, %v614, 0
        %v623 = vsel %vm618, %v615, 0
        %v626 = vsel %vm618, %v616, 0
        %v629 = vsel %vm618, %v617, 0
        %vm631 = vcmask 1040384
        %v633 = vsel %vm631, %v612, 0
        %v636 = vsel %vm631, %v613, 0
        %v638 = vand.u32 %v593, 4294901760
        %639 = vmatprep.subr.mxu0 %v638
        %v640 = vand.u32 %v592, 4294901760
        %641 = vmatpush1.msra.mxu0 %v640
        %v642 = vand.u32 %v595, 4294901760
        %643 = vmatprep.subr.mxu0 %v642
        %v644 = vand.u32 %v594, 4294901760
        %645 = vmatpush1.msra.mxu0 %v644
        %v646 = vand.u32 %v597, 4294901760
        %647 = vmatprep.subr.mxu0 %v646
        %v648 = vand.u32 %v596, 4294901760
        %649 = vmatpush1.msra.mxu0 %v648
        %v650 = vand.u32 %v599, 4294901760
        %651 = vmatprep.subr.mxu0 %v650
        %v652 = vand.u32 %v598, 4294901760
        %653 = vmatpush1.msra.mxu0 %v652
        %v654 = vand.u32 %v601, 4294901760
        %655 = vmatprep.subr.mxu0 %v654
        %v656 = vand.u32 %v600, 4294901760
        %657 = vmatpush1.msra.mxu0 %v656
        %v658 = vand.u32 %v603, 4294901760
        %659 = vmatprep.subr.mxu0 %v658
        %v660 = vand.u32 %v602, 4294901760
        %661 = vmatpush1.msra.mxu0 %v660
        %v662 = vand.u32 %v605, 4294901760
        %663 = vmatprep.subr.mxu0 %v662
        %v664 = vand.u32 %v604, 4294901760
        %665 = vmatpush1.msra.mxu0 %v664
        %v666 = vand.u32 %v607, 4294901760
        %667 = vmatprep.subr.mxu0 %v666
        %v668 = vand.u32 %v606, 4294901760
        %669 = vmatpush1.msra.mxu0 %v668
        %v670 = vand.u32 %v609, 4294901760
        %671 = vmatprep.subr.mxu0 %v670
        %v672 = vand.u32 %v608, 4294901760
        %673 = vmatpush1.msra.mxu0 %v672
        %v674 = vand.u32 %v611, 4294901760
        %675 = vmatprep.subr.mxu0 %v674
        %v676 = vand.u32 %v610, 4294901760
        %677 = vmatpush1.msra.mxu0 %v676
        %v678 = vand.u32 %v636, 4294901760
        %679 = vmatprep.subr.mxu0 %v678
        %v680 = vand.u32 %v633, 4294901760
        %681 = vmatpush1.msra.mxu0 %v680
        %682 = vmatprep.subr.mxu0 0.0
        %683 = vmatpush1.msra.mxu0 0.0
        %684 = vmatprep.subr.mxu0 0.0
        %685 = vmatpush1.msra.mxu0 0.0
        %686 = vmatprep.subr.mxu0 0.0
        %687 = vmatpush1.msra.mxu0 0.0
        %688 = vmatprep.subr.mxu0 0.0
        %689 = vmatpush1.msra.mxu0 0.0
        %690 = vmatprep.subr.mxu0 0.0
        %691 = vmatpush1.msra.mxu0 0.0
        %692 = vmatprep.subr.mxu0 0.0
        %693 = vmatpush1.msra.mxu0 0.0
        %694 = vmatprep.subr.mxu0 0.0
        %695 = vmatpush1.msra.mxu0 0.0
        %696 = vmatprep.subr.mxu0 0.0
        %697 = vmatpush1.msra.mxu0 0.0
        %698 = vmatprep.subr.mxu0 0.0
        %699 = vmatpush1.msra.mxu0 0.0
        %700 = vmatprep.subr.mxu0 0.0
        %701 = vmatpush1.msra.mxu0 0.0
        %702 = vmatprep.subr.mxu0 0.0
        %703 = vmatpush1.msra.mxu0 0.0
        %704 = vmatprep.subr.mxu0 0.0
        %705 = vmatpush1.msra.mxu0 0.0
        %706 = vmatprep.subr.mxu0 0.0
        %707 = vmatpush1.msra.mxu0 0.0
        %708 = vmatprep.subr.mxu0 0.0
        %709 = vmatpush1.msra.mxu0 0.0
        %710 = vmatprep.subr.mxu0 0.0
        %711 = vmatpush1.msra.mxu0 0.0
        %712 = vmatprep.subr.mxu0 0.0
        %713 = vmatpush1.msra.mxu0 0.0
        %714 = vmatprep.subr.mxu0 0.0
        %715 = vmatpush1.msra.mxu0 0.0
        %716 = vmatprep.subr.mxu0 0.0
        %717 = vmatpush1.msra.mxu0 0.0
        %718 = vmatprep.subr.mxu0 0.0
        %719 = vmatpush1.msra.mxu0 0.0
        %720 = vmatprep.subr.mxu0 0.0
        %721 = vmatpush1.msra.mxu0 0.0
        %722 = vmatprep.subr.mxu0 0.0
        %723 = vmatpush1.msra.mxu0 0.0
        %724 = vmatprep.mubr.f32.mxu0 0.0
        %v725 = vand.u32 %v620, 4294901760
        %v726 = vsub.f32 %v620, %v725
        %v727 = vand.u32 %v726, 4294901760
        %v728 = vsub.f32 %v726, %v727
        %v729 = vand.u32 %v728, 4294901760
        %730 = vmatmul.mubr.f32.gmra.mrb[0].mxu0 %v729
        %v731 = vpop.f32.mrb[0].mxu0
        %v732 = vadd.f32 0.0, %v731
        %v733 = vpop.f32.mrb[0].mxu0
        %v734 = vadd.f32 0.0, %v733
        %735 = vmatprep.mubr.f32.mxu0 0.0
        %v736 = vand.u32 %v623, 4294901760
        %v737 = vsub.f32 %v623, %v736
        %v738 = vand.u32 %v737, 4294901760
        %v739 = vsub.f32 %v737, %v738
        %v740 = vand.u32 %v739, 4294901760
        %741 = vmatmul.mubr.f32.gmra.mrb[0].mxu0 %v740
        %v742 = vpop.f32.mrb[0].mxu0
        %v743 = vadd.f32 0.0, %v742
        %v744 = vpop.f32.mrb[0].mxu0
        %v745 = vadd.f32 0.0, %v744
        %746 = vmatprep.mubr.f32.mxu0 0.0
        %v747 = vand.u32 %v626, 4294901760
        %v748 = vsub.f32 %v626, %v747
        %v749 = vand.u32 %v748, 4294901760
        %v750 = vsub.f32 %v748, %v749
        %v751 = vand.u32 %v750, 4294901760
        %752 = vmatmul.mubr.f32.gmra.mrb[0].mxu0 %v751
        %v753 = vpop.f32.mrb[0].mxu0
        %v754 = vadd.f32 0.0, %v753
        %v755 = vpop.f32.mrb[0].mxu0
        %v756 = vadd.f32 0.0, %v755
        %757 = vmatprep.mubr.f32.mxu0 0.0
        %v758 = vand.u32 %v629, 4294901760
        %v759 = vsub.f32 %v629, %v758
        %v760 = vand.u32 %v759, 4294901760
        %v761 = vsub.f32 %v759, %v760
        %v762 = vand.u32 %v761, 4294901760
        %763 = vmatmul.mubr.f32.gmra.mrb[0].mxu0 %v762
        %v764 = vpop.f32.mrb[0].mxu0
        %v765 = vadd.f32 0.0, %v764
        %v766 = vpop.f32.mrb[0].mxu0
        %v767 = vadd.f32 0.0, %v766
        %768 = vdwg.mxu0
        %v769 = vand.u32 %v593, 4294901760
        %v770 = vsub.f32 %v593, %v769
        %v771 = vand.u32 %v770, 4294901760
        %v772 = vsub.f32 %v770, %v771
        %v773 = vand.u32 %v772, 4294901760
        %774 = vmatprep.subr.mxu0 %v773
        %v775 = vand.u32 %v592, 4294901760
        %v776 = vsub.f32 %v592, %v775
        %v777 = vand.u32 %v776, 4294901760
        %v778 = vsub.f32 %v776, %v777
        %v779 = vand.u32 %v778, 4294901760
        %780 = vmatpush1.msra.mxu0 %v779
        %v781 = vand.u32 %v595, 4294901760
        %v782 = vsub.f32 %v595, %v781
        %v783 = vand.u32 %v782, 4294901760
        %v784 = vsub.f32 %v782, %v783
        %v785 = vand.u32 %v784, 4294901760
        %786 = vmatprep.subr.mxu0 %v785
        %v787 = vand.u32 %v594, 4294901760
        %v788 = vsub.f32 %v594, %v787
        %v789 = vand.u32 %v788, 4294901760
        %v790 = vsub.f32 %v788, %v789
        %v791 = vand.u32 %v790, 4294901760
        %792 = vmatpush1.msra.mxu0 %v791
        %v793 = vand.u32 %v597, 4294901760
        %v794 = vsub.f32 %v597, %v793
        %v795 = vand.u32 %v794, 4294901760
        %v796 = vsub.f32 %v794, %v795
        %v797 = vand.u32 %v796, 4294901760
        %798 = vmatprep.subr.mxu0 %v797
        %v799 = vand.u32 %v596, 4294901760
        %v800 = vsub.f32 %v596, %v799
        %v801 = vand.u32 %v800, 4294901760
        %v802 = vsub.f32 %v800, %v801
        %v803 = vand.u32 %v802, 4294901760
        %804 = vmatpush1.msra.mxu0 %v803
        %v805 = vand.u32 %v599, 4294901760
        %v806 = vsub.f32 %v599, %v805
        %v807 = vand.u32 %v806, 4294901760
        %v808 = vsub.f32 %v806, %v807
        %v809 = vand.u32 %v808, 4294901760
        %810 = vmatprep.subr.mxu0 %v809
        %v811 = vand.u32 %v598, 4294901760
        %v812 = vsub.f32 %v598, %v811
        %v813 = vand.u32 %v812, 4294901760
        %v814 = vsub.f32 %v812, %v813
        %v815 = vand.u32 %v814, 4294901760
        %816 = vmatpush1.msra.mxu0 %v815
        %v817 = vand.u32 %v601, 4294901760
        %v818 = vsub.f32 %v601, %v817
        %v819 = vand.u32 %v818, 4294901760
        %v820 = vsub.f32 %v818, %v819
        %v821 = vand.u32 %v820, 4294901760
        %822 = vmatprep.subr.mxu0 %v821
        %v823 = vand.u32 %v600, 4294901760
        %v824 = vsub.f32 %v600, %v823
        %v825 = vand.u32 %v824, 4294901760
        %v826 = vsub.f32 %v824, %v825
        %v827 = vand.u32 %v826, 4294901760
        %828 = vmatpush1.msra.mxu0 %v827
        %v829 = vand.u32 %v603, 4294901760
        %v830 = vsub.f32 %v603, %v829
        %v831 = vand.u32 %v830, 4294901760
        %v832 = vsub.f32 %v830, %v831
        %v833 = vand.u32 %v832, 4294901760
        %834 = vmatprep.subr.mxu0 %v833
        %v835 = vand.u32 %v602, 4294901760
        %v836 = vsub.f32 %v602, %v835
        %v837 = vand.u32 %v836, 4294901760
        %v838 = vsub.f32 %v836, %v837
        %v839 = vand.u32 %v838, 4294901760
        %840 = vmatpush1.msra.mxu0 %v839
        %v841 = vand.u32 %v605, 4294901760
        %v842 = vsub.f32 %v605, %v841
        %v843 = vand.u32 %v842, 4294901760
        %v844 = vsub.f32 %v842, %v843
        %v845 = vand.u32 %v844, 4294901760
        %846 = vmatprep.subr.mxu0 %v845
        %v847 = vand.u32 %v604, 4294901760
        %v848 = vsub.f32 %v604, %v847
        %v849 = vand.u32 %v848, 4294901760
        %v850 = vsub.f32 %v848, %v849
        %v851 = vand.u32 %v850, 4294901760
        %852 = vmatpush1.msra.mxu0 %v851
        %v853 = vand.u32 %v607, 4294901760
        %v854 = vsub.f32 %v607, %v853
        %v855 = vand.u32 %v854, 4294901760
        %v856 = vsub.f32 %v854, %v855
        %v857 = vand.u32 %v856, 4294901760
        %858 = vmatprep.subr.mxu0 %v857
        %v859 = vand.u32 %v606, 4294901760
        %v860 = vsub.f32 %v606, %v859
        %v861 = vand.u32 %v860, 4294901760
        %v862 = vsub.f32 %v860, %v861
        %v863 = vand.u32 %v862, 4294901760
        %864 = vmatpush1.msra.mxu0 %v863
        %v865 = vand.u32 %v609, 4294901760
        %v866 = vsub.f32 %v609, %v865
        %v867 = vand.u32 %v866, 4294901760
        %v868 = vsub.f32 %v866, %v867
        %v869 = vand.u32 %v868, 4294901760
        %870 = vmatprep.subr.mxu0 %v869
        %v871 = vand.u32 %v608, 4294901760
        %v872 = vsub.f32 %v608, %v871
        %v873 = vand.u32 %v872, 4294901760
        %v874 = vsub.f32 %v872, %v873
        %v875 = vand.u32 %v874, 4294901760
        %876 = vmatpush1.msra.mxu0 %v875
        %v877 = vand.u32 %v611, 4294901760
        %v878 = vsub.f32 %v611, %v877
        %v879 = vand.u32 %v878, 4294901760
        %v880 = vsub.f32 %v878, %v879
        %v881 = vand.u32 %v880, 4294901760
        %882 = vmatprep.subr.mxu0 %v881
        %v883 = vand.u32 %v610, 4294901760
        %v884 = vsub.f32 %v610, %v883
        %v885 = vand.u32 %v884, 4294901760
        %v886 = vsub.f32 %v884, %v885
        %v887 = vand.u32 %v886, 4294901760
        %888 = vmatpush1.msra.mxu0 %v887
        %v889 = vand.u32 %v636, 4294901760
        %v890 = vsub.f32 %v636, %v889
        %v891 = vand.u32 %v890, 4294901760
        %v892 = vsub.f32 %v890, %v891
        %v893 = vand.u32 %v892, 4294901760
        %894 = vmatprep.subr.mxu0 %v893
        %v895 = vand.u32 %v633, 4294901760
        %v896 = vsub.f32 %v633, %v895
        %v897 = vand.u32 %v896, 4294901760
        %v898 = vsub.f32 %v896, %v897
        %v899 = vand.u32 %v898, 4294901760
        %900 = vmatpush1.msra.mxu0 %v899
        %901 = vmatprep.subr.mxu0 0.0
        %902 = vmatpush1.msra.mxu0 0.0
        %903 = vmatprep.subr.mxu0 0.0
        %904 = vmatpush1.msra.mxu0 0.0
        %905 = vmatprep.subr.mxu0 0.0
        %906 = vmatpush1.msra.mxu0 0.0
        %907 = vmatprep.subr.mxu0 0.0
        %908 = vmatpush1.msra.mxu0 0.0
        %909 = vmatprep.subr.mxu0 0.0
        %910 = vmatpush1.msra.mxu0 0.0
        %911 = vmatprep.subr.mxu0 0.0
        %912 = vmatpush1.msra.mxu0 0.0
        %913 = vmatprep.subr.mxu0 0.0
        %914 = vmatpush1.msra.mxu0 0.0
        %915 = vmatprep.subr.mxu0 0.0
        %916 = vmatpush1.msra.mxu0 0.0
        %917 = vmatprep.subr.mxu0 0.0
        %918 = vmatpush1.msra.mxu0 0.0
        %919 = vmatprep.subr.mxu0 0.0
        %920 = vmatpush1.msra.mxu0 0.0
        %921 = vmatprep.subr.mxu0 0.0
        %922 = vmatpush1.msra.mxu0 0.0
        %923 = vmatprep.subr.mxu0 0.0
        %924 = vmatpush1.msra.mxu0 0.0
        %925 = vmatprep.subr.mxu0 0.0
        %926 = vmatpush1.msra.mxu0 0.0
        %927 = vmatprep.subr.mxu0 0.0
        %928 = vmatpush1.msra.mxu0 0.0
        %929 = vmatprep.subr.mxu0 0.0
        %930 = vmatpush1.msra.mxu0 0.0
        %931 = vmatprep.subr.mxu0 0.0
        %932 = vmatpush1.msra.mxu0 0.0
        %933 = vmatprep.subr.mxu0 0.0
        %934 = vmatpush1.msra.mxu0 0.0
        %935 = vmatprep.subr.mxu0 0.0
        %936 = vmatpush1.msra.mxu0 0.0
        %937 = vmatprep.subr.mxu0 0.0
        %938 = vmatpush1.msra.mxu0 0.0
        %939 = vmatprep.subr.mxu0 0.0
        %940 = vmatpush1.msra.mxu0 0.0
        %941 = vmatprep.subr.mxu0 0.0
        %942 = vmatpush1.msra.mxu0 0.0
        %943 = vmatprep.mubr.f32.mxu0 0.0
        %v944 = vand.u32 %v620, 4294901760
        %945 = vmatmul.mubr.f32.gmra.mrb[0].mxu0 %v944
        %v946 = vpop.f32.mrb[0].mxu0
        %v947 = vadd.f32 %v732, %v946
        %v948 = vpop.f32.mrb[0].mxu0
        %v949 = vadd.f32 %v734, %v948
        %950 = vmatprep.mubr.f32.mxu0 0.0
        %v951 = vand.u32 %v623, 4294901760
        %952 = vmatmul.mubr.f32.gmra.mrb[0].mxu0 %v951
        %v953 = vpop.f32.mrb[0].mxu0
        %v954 = vadd.f32 %v743, %v953
        %v955 = vpop.f32.mrb[0].mxu0
        %v956 = vadd.f32 %v745, %v955
        %957 = vmatprep.mubr.f32.mxu0 0.0
        %v958 = vand.u32 %v626, 4294901760
        %959 = vmatmul.mubr.f32.gmra.mrb[0].mxu0 %v958
        %v960 = vpop.f32.mrb[0].mxu0
        %v961 = vadd.f32 %v754, %v960
        %v962 = vpop.f32.mrb[0].mxu0
        %v963 = vadd.f32 %v756, %v962
        %964 = vmatprep.mubr.f32.mxu0 0.0
        %v965 = vand.u32 %v629, 4294901760
        %966 = vmatmul.mubr.f32.gmra.mrb[0].mxu0 %v965
        %v967 = vpop.f32.mrb[0].mxu0
        %v968 = vadd.f32 %v765, %v967
        %v969 = vpop.f32.mrb[0].mxu0
        %v970 = vadd.f32 %v767, %v969
        %971 = vdwg.mxu0
        %v972 = vand.u32 %v593, 4294901760
        %v973 = vsub.f32 %v593, %v972
        %974 = vmatprep.subr.mxu0 %v973
        %v975 = vand.u32 %v592, 4294901760
        %v976 = vsub.f32 %v592, %v975
        %977 = vmatpush1.msra.mxu0 %v976
        %v978 = vand.u32 %v595, 4294901760
        %v979 = vsub.f32 %v595, %v978
        %980 = vmatprep.subr.mxu0 %v979
        %v981 = vand.u32 %v594, 4294901760
        %v982 = vsub.f32 %v594, %v981
        %983 = vmatpush1.msra.mxu0 %v982
        %v984 = vand.u32 %v597, 4294901760
        %v985 = vsub.f32 %v597, %v984
        %986 = vmatprep.subr.mxu0 %v985
        %v987 = vand.u32 %v596, 4294901760
        %v988 = vsub.f32 %v596, %v987
        %989 = vmatpush1.msra.mxu0 %v988
        %v990 = vand.u32 %v599, 4294901760
        %v991 = vsub.f32 %v599, %v990
        %992 = vmatprep.subr.mxu0 %v991
        %v993 = vand.u32 %v598, 4294901760
        %v994 = vsub.f32 %v598, %v993
        %995 = vmatpush1.msra.mxu0 %v994
        %v996 = vand.u32 %v601, 4294901760
        %v997 = vsub.f32 %v601, %v996
        %998 = vmatprep.subr.mxu0 %v997
        %v999 = vand.u32 %v600, 4294901760
        %v1000 = vsub.f32 %v600, %v999
        %1001 = vmatpush1.msra.mxu0 %v1000
        %v1002 = vand.u32 %v603, 4294901760
        %v1003 = vsub.f32 %v603, %v1002
        %1004 = vmatprep.subr.mxu0 %v1003
        %v1005 = vand.u32 %v602, 4294901760
        %v1006 = vsub.f32 %v602, %v1005
        %1007 = vmatpush1.msra.mxu0 %v1006
        %v1008 = vand.u32 %v605, 4294901760
        %v1009 = vsub.f32 %v605, %v1008
        %1010 = vmatprep.subr.mxu0 %v1009
        %v1011 = vand.u32 %v604, 4294901760
        %v1012 = vsub.f32 %v604, %v1011
        %1013 = vmatpush1.msra.mxu0 %v1012
        %v1014 = vand.u32 %v607, 4294901760
        %v1015 = vsub.f32 %v607, %v1014
        %1016 = vmatprep.subr.mxu0 %v1015
        %v1017 = vand.u32 %v606, 4294901760
        %v1018 = vsub.f32 %v606, %v1017
        %1019 = vmatpush1.msra.mxu0 %v1018
        %v1020 = vand.u32 %v609, 4294901760
        %v1021 = vsub.f32 %v609, %v1020
        %1022 = vmatprep.subr.mxu0 %v1021
        %v1023 = vand.u32 %v608, 4294901760
        %v1024 = vsub.f32 %v608, %v1023
        %1025 = vmatpush1.msra.mxu0 %v1024
        %v1026 = vand.u32 %v611, 4294901760
        %v1027 = vsub.f32 %v611, %v1026
        %1028 = vmatprep.subr.mxu0 %v1027
        %v1029 = vand.u32 %v610, 4294901760
        %v1030 = vsub.f32 %v610, %v1029
        %1031 = vmatpush1.msra.mxu0 %v1030
        %v1032 = vand.u32 %v636, 4294901760
        %v1033 = vsub.f32 %v636, %v1032
        %1034 = vmatprep.subr.mxu0 %v1033
        %v1035 = vand.u32 %v633, 4294901760
        %v1036 = vsub.f32 %v633, %v1035
        %1037 = vmatpush1.msra.mxu0 %v1036
        %1038 = vmatprep.subr.mxu0 0.0
        %1039 = vmatpush1.msra.mxu0 0.0
        %1040 = vmatprep.subr.mxu0 0.0
        %1041 = vmatpush1.msra.mxu0 0.0
        %1042 = vmatprep.subr.mxu0 0.0
        %1043 = vmatpush1.msra.mxu0 0.0
        %1044 = vmatprep.subr.mxu0 0.0
        %1045 = vmatpush1.msra.mxu0 0.0
        %1046 = vmatprep.subr.mxu0 0.0
        %1047 = vmatpush1.msra.mxu0 0.0
        %1048 = vmatprep.subr.mxu0 0.0
        %1049 = vmatpush1.msra.mxu0 0.0
        %1050 = vmatprep.subr.mxu0 0.0
        %1051 = vmatpush1.msra.mxu0 0.0
        %1052 = vmatprep.subr.mxu0 0.0
        %1053 = vmatpush1.msra.mxu0 0.0
        %1054 = vmatprep.subr.mxu0 0.0
        %1055 = vmatpush1.msra.mxu0 0.0
        %1056 = vmatprep.subr.mxu0 0.0
        %1057 = vmatpush1.msra.mxu0 0.0
        %1058 = vmatprep.subr.mxu0 0.0
        %1059 = vmatpush1.msra.mxu0 0.0
        %1060 = vmatprep.subr.mxu0 0.0
        %1061 = vmatpush1.msra.mxu0 0.0
        %1062 = vmatprep.subr.mxu0 0.0
        %1063 = vmatpush1.msra.mxu0 0.0
        %1064 = vmatprep.subr.mxu0 0.0
        %1065 = vmatpush1.msra.mxu0 0.0
        %1066 = vmatprep.subr.mxu0 0.0
        %1067 = vmatpush1.msra.mxu0 0.0
        %1068 = vmatprep.subr.mxu0 0.0
        %1069 = vmatpush1.msra.mxu0 0.0
        %1070 = vmatprep.subr.mxu0 0.0
        %1071 = vmatpush1.msra.mxu0 0.0
        %1072 = vmatprep.subr.mxu0 0.0
        %1073 = vmatpush1.msra.mxu0 0.0
        %1074 = vmatprep.subr.mxu0 0.0
        %1075 = vmatpush1.msra.mxu0 0.0
        %1076 = vmatprep.subr.mxu0 0.0
        %1077 = vmatpush1.msra.mxu0 0.0
        %1078 = vmatprep.subr.mxu0 0.0
        %1079 = vmatpush1.msra.mxu0 0.0
        %1080 = vmatprep.mubr.f32.mxu0 0.0
        %v1081 = vand.u32 %v620, 4294901760
        %v1082 = vsub.f32 %v620, %v1081
        %1083 = vmatmul.mubr.f32.gmra.mrb[0].mxu0 %v1082
        %v1084 = vpop.f32.mrb[0].mxu0
        %v1085 = vadd.f32 %v947, %v1084
        %v1086 = vpop.f32.mrb[0].mxu0
        %v1087 = vadd.f32 %v949, %v1086
        %1088 = vmatprep.mubr.f32.mxu0 0.0
        %v1089 = vand.u32 %v623, 4294901760
        %v1090 = vsub.f32 %v623, %v1089
        %1091 = vmatmul.mubr.f32.gmra.mrb[0].mxu0 %v1090
        %v1092 = vpop.f32.mrb[0].mxu0
        %v1093 = vadd.f32 %v954, %v1092
        %v1094 = vpop.f32.mrb[0].mxu0
        %v1095 = vadd.f32 %v956, %v1094
        %1096 = vmatprep.mubr.f32.mxu0 0.0
        %v1097 = vand.u32 %v626, 4294901760
        %v1098 = vsub.f32 %v626, %v1097
        %1099 = vmatmul.mubr.f32.gmra.mrb[0].mxu0 %v1098
        %v1100 = vpop.f32.mrb[0].mxu0
        %v1101 = vadd.f32 %v961, %v1100
        %v1102 = vpop.f32.mrb[0].mxu0
        %v1103 = vadd.f32 %v963, %v1102
        %1104 = vmatprep.mubr.f32.mxu0 0.0
        %v1105 = vand.u32 %v629, 4294901760
        %v1106 = vsub.f32 %v629, %v1105
        %1107 = vmatmul.mubr.f32.gmra.mrb[0].mxu0 %v1106
        %v1108 = vpop.f32.mrb[0].mxu0
        %v1109 = vadd.f32 %v968, %v1108
        %v1110 = vpop.f32.mrb[0].mxu0
        %v1111 = vadd.f32 %v970, %v1110
        %1112 = vdwg.mxu0
        %v1113 = vand.u32 %v593, 4294901760
        %1114 = vmatprep.subr.mxu0 %v1113
        %v1115 = vand.u32 %v592, 4294901760
        %1116 = vmatpush1.msra.mxu0 %v1115
        %v1117 = vand.u32 %v595, 4294901760
        %1118 = vmatprep.subr.mxu0 %v1117
        %v1119 = vand.u32 %v594, 4294901760
        %1120 = vmatpush1.msra.mxu0 %v1119
        %v1121 = vand.u32 %v597, 4294901760
        %1122 = vmatprep.subr.mxu0 %v1121
        %v1123 = vand.u32 %v596, 4294901760
        %1124 = vmatpush1.msra.mxu0 %v1123
        %v1125 = vand.u32 %v599, 4294901760
        %1126 = vmatprep.subr.mxu0 %v1125
        %v1127 = vand.u32 %v598, 4294901760
        %1128 = vmatpush1.msra.mxu0 %v1127
        %v1129 = vand.u32 %v601, 4294901760
        %1130 = vmatprep.subr.mxu0 %v1129
        %v1131 = vand.u32 %v600, 4294901760
        %1132 = vmatpush1.msra.mxu0 %v1131
        %v1133 = vand.u32 %v603, 4294901760
        %1134 = vmatprep.subr.mxu0 %v1133
        %v1135 = vand.u32 %v602, 4294901760
        %1136 = vmatpush1.msra.mxu0 %v1135
        %v1137 = vand.u32 %v605, 4294901760
        %1138 = vmatprep.subr.mxu0 %v1137
        %v1139 = vand.u32 %v604, 4294901760
        %1140 = vmatpush1.msra.mxu0 %v1139
        %v1141 = vand.u32 %v607, 4294901760
        %1142 = vmatprep.subr.mxu0 %v1141
        %v1143 = vand.u32 %v606, 4294901760
        %1144 = vmatpush1.msra.mxu0 %v1143
        %v1145 = vand.u32 %v609, 4294901760
        %1146 = vmatprep.subr.mxu0 %v1145
        %v1147 = vand.u32 %v608, 4294901760
        %1148 = vmatpush1.msra.mxu0 %v1147
        %v1149 = vand.u32 %v611, 4294901760
        %1150 = vmatprep.subr.mxu0 %v1149
        %v1151 = vand.u32 %v610, 4294901760
        %1152 = vmatpush1.msra.mxu0 %v1151
        %v1153 = vand.u32 %v636, 4294901760
        %1154 = vmatprep.subr.mxu0 %v1153
        %v1155 = vand.u32 %v633, 4294901760
        %1156 = vmatpush1.msra.mxu0 %v1155
        %1157 = vmatprep.subr.mxu0 0.0
        %1158 = vmatpush1.msra.mxu0 0.0
        %1159 = vmatprep.subr.mxu0 0.0
        %1160 = vmatpush1.msra.mxu0 0.0
        %1161 = vmatprep.subr.mxu0 0.0
        %1162 = vmatpush1.msra.mxu0 0.0
        %1163 = vmatprep.subr.mxu0 0.0
        %1164 = vmatpush1.msra.mxu0 0.0
        %1165 = vmatprep.subr.mxu0 0.0
        %1166 = vmatpush1.msra.mxu0 0.0
        %1167 = vmatprep.subr.mxu0 0.0
        %1168 = vmatpush1.msra.mxu0 0.0
        %1169 = vmatprep.subr.mxu0 0.0
        %1170 = vmatpush1.msra.mxu0 0.0
        %1171 = vmatprep.subr.mxu0 0.0
        %1172 = vmatpush1.msra.mxu0 0.0
        %1173 = vmatprep.subr.mxu0 0.0
        %1174 = vmatpush1.msra.mxu0 0.0
        %1175 = vmatprep.subr.mxu0 0.0
        %1176 = vmatpush1.msra.mxu0 0.0
        %1177 = vmatprep.subr.mxu0 0.0
        %1178 = vmatpush1.msra.mxu0 0.0
        %1179 = vmatprep.subr.mxu0 0.0
        %1180 = vmatpush1.msra.mxu0 0.0
        %1181 = vmatprep.subr.mxu0 0.0
        %1182 = vmatpush1.msra.mxu0 0.0
        %1183 = vmatprep.subr.mxu0 0.0
        %1184 = vmatpush1.msra.mxu0 0.0
        %1185 = vmatprep.subr.mxu0 0.0
        %1186 = vmatpush1.msra.mxu0 0.0
        %1187 = vmatprep.subr.mxu0 0.0
        %1188 = vmatpush1.msra.mxu0 0.0
        %1189 = vmatprep.subr.mxu0 0.0
        %1190 = vmatpush1.msra.mxu0 0.0
        %1191 = vmatprep.subr.mxu0 0.0
        %1192 = vmatpush1.msra.mxu0 0.0
        %1193 = vmatprep.subr.mxu0 0.0
        %1194 = vmatpush1.msra.mxu0 0.0
        %1195 = vmatprep.subr.mxu0 0.0
        %1196 = vmatpush1.msra.mxu0 0.0
        %1197 = vmatprep.subr.mxu0 0.0
        %1198 = vmatpush1.msra.mxu0 0.0
        %1199 = vmatprep.mubr.f32.mxu0 0.0
        %v1200 = vand.u32 %v620, 4294901760
        %v1201 = vsub.f32 %v620, %v1200
        %v1202 = vand.u32 %v1201, 4294901760
        %1203 = vmatmul.mubr.f32.gmra.mrb[0].mxu0 %v1202
        %v1204 = vpop.f32.mrb[0].mxu0
        %v1205 = vadd.f32 %v1085, %v1204
        %v1206 = vpop.f32.mrb[0].mxu0
        %v1207 = vadd.f32 %v1087, %v1206
        %1208 = vmatprep.mubr.f32.mxu0 0.0
        %v1209 = vand.u32 %v623, 4294901760
        %v1210 = vsub.f32 %v623, %v1209
        %v1211 = vand.u32 %v1210, 4294901760
        %1212 = vmatmul.mubr.f32.gmra.mrb[0].mxu0 %v1211
        %v1213 = vpop.f32.mrb[0].mxu0
        %v1214 = vadd.f32 %v1093, %v1213
        %v1215 = vpop.f32.mrb[0].mxu0
        %v1216 = vadd.f32 %v1095, %v1215
        %1217 = vmatprep.mubr.f32.mxu0 0.0
        %v1218 = vand.u32 %v626, 4294901760
        %v1219 = vsub.f32 %v626, %v1218
        %v1220 = vand.u32 %v1219, 4294901760
        %1221 = vmatmul.mubr.f32.gmra.mrb[0].mxu0 %v1220
        %v1222 = vpop.f32.mrb[0].mxu0
        %v1223 = vadd.f32 %v1101, %v1222
        %v1224 = vpop.f32.mrb[0].mxu0
        %v1225 = vadd.f32 %v1103, %v1224
        %1226 = vmatprep.mubr.f32.mxu0 0.0
        %v1227 = vand.u32 %v629, 4294901760
        %v1228 = vsub.f32 %v629, %v1227
        %v1229 = vand.u32 %v1228, 4294901760
        %1230 = vmatmul.mubr.f32.gmra.mrb[0].mxu0 %v1229
        %v1231 = vpop.f32.mrb[0].mxu0
        %v1232 = vadd.f32 %v1109, %v1231
        %v1233 = vpop.f32.mrb[0].mxu0
        %v1234 = vadd.f32 %v1111, %v1233
        %1235 = vdwg.mxu0
        %v1236 = vand.u32 %v593, 4294901760
        %v1237 = vsub.f32 %v593, %v1236
        %v1238 = vand.u32 %v1237, 4294901760
        %1239 = vmatprep.subr.mxu0 %v1238
        %v1240 = vand.u32 %v592, 4294901760
        %v1241 = vsub.f32 %v592, %v1240
        %v1242 = vand.u32 %v1241, 4294901760
        %1243 = vmatpush1.msra.mxu0 %v1242
        %v1244 = vand.u32 %v595, 4294901760
        %v1245 = vsub.f32 %v595, %v1244
        %v1246 = vand.u32 %v1245, 4294901760
        %1247 = vmatprep.subr.mxu0 %v1246
        %v1248 = vand.u32 %v594, 4294901760
        %v1249 = vsub.f32 %v594, %v1248
        %v1250 = vand.u32 %v1249, 4294901760
        %1251 = vmatpush1.msra.mxu0 %v1250
        %v1252 = vand.u32 %v597, 4294901760
        %v1253 = vsub.f32 %v597, %v1252
        %v1254 = vand.u32 %v1253, 4294901760
        %1255 = vmatprep.subr.mxu0 %v1254
        %v1256 = vand.u32 %v596, 4294901760
        %v1257 = vsub.f32 %v596, %v1256
        %v1258 = vand.u32 %v1257, 4294901760
        %1259 = vmatpush1.msra.mxu0 %v1258
        %v1260 = vand.u32 %v599, 4294901760
        %v1261 = vsub.f32 %v599, %v1260
        %v1262 = vand.u32 %v1261, 4294901760
        %1263 = vmatprep.subr.mxu0 %v1262
        %v1264 = vand.u32 %v598, 4294901760
        %v1265 = vsub.f32 %v598, %v1264
        %v1266 = vand.u32 %v1265, 4294901760
        %1267 = vmatpush1.msra.mxu0 %v1266
        %v1268 = vand.u32 %v601, 4294901760
        %v1269 = vsub.f32 %v601, %v1268
        %v1270 = vand.u32 %v1269, 4294901760
        %1271 = vmatprep.subr.mxu0 %v1270
        %v1272 = vand.u32 %v600, 4294901760
        %v1273 = vsub.f32 %v600, %v1272
        %v1274 = vand.u32 %v1273, 4294901760
        %1275 = vmatpush1.msra.mxu0 %v1274
        %v1276 = vand.u32 %v603, 4294901760
        %v1277 = vsub.f32 %v603, %v1276
        %v1278 = vand.u32 %v1277, 4294901760
        %1279 = vmatprep.subr.mxu0 %v1278
        %v1280 = vand.u32 %v602, 4294901760
        %v1281 = vsub.f32 %v602, %v1280
        %v1282 = vand.u32 %v1281, 4294901760
        %1283 = vmatpush1.msra.mxu0 %v1282
        %v1284 = vand.u32 %v605, 4294901760
        %v1285 = vsub.f32 %v605, %v1284
        %v1286 = vand.u32 %v1285, 4294901760
        %1287 = vmatprep.subr.mxu0 %v1286
        %v1288 = vand.u32 %v604, 4294901760
        %v1289 = vsub.f32 %v604, %v1288
        %v1290 = vand.u32 %v1289, 4294901760
        %1291 = vmatpush1.msra.mxu0 %v1290
        %v1292 = vand.u32 %v607, 4294901760
        %v1293 = vsub.f32 %v607, %v1292
        %v1294 = vand.u32 %v1293, 4294901760
        %1295 = vmatprep.subr.mxu0 %v1294
        %v1296 = vand.u32 %v606, 4294901760
        %v1297 = vsub.f32 %v606, %v1296
        %v1298 = vand.u32 %v1297, 4294901760
        %1299 = vmatpush1.msra.mxu0 %v1298
        %v1300 = vand.u32 %v609, 4294901760
        %v1301 = vsub.f32 %v609, %v1300
        %v1302 = vand.u32 %v1301, 4294901760
        %1303 = vmatprep.subr.mxu0 %v1302
        %v1304 = vand.u32 %v608, 4294901760
        %v1305 = vsub.f32 %v608, %v1304
        %v1306 = vand.u32 %v1305, 4294901760
        %1307 = vmatpush1.msra.mxu0 %v1306
        %v1308 = vand.u32 %v611, 4294901760
        %v1309 = vsub.f32 %v611, %v1308
        %v1310 = vand.u32 %v1309, 4294901760
        %1311 = vmatprep.subr.mxu0 %v1310
        %v1312 = vand.u32 %v610, 4294901760
        %v1313 = vsub.f32 %v610, %v1312
        %v1314 = vand.u32 %v1313, 4294901760
        %1315 = vmatpush1.msra.mxu0 %v1314
        %v1316 = vand.u32 %v636, 4294901760
        %v1317 = vsub.f32 %v636, %v1316
        %v1318 = vand.u32 %v1317, 4294901760
        %1319 = vmatprep.subr.mxu0 %v1318
        %v1320 = vand.u32 %v633, 4294901760
        %v1321 = vsub.f32 %v633, %v1320
        %v1322 = vand.u32 %v1321, 4294901760
        %1323 = vmatpush1.msra.mxu0 %v1322
        %1324 = vmatprep.subr.mxu0 0.0
        %1325 = vmatpush1.msra.mxu0 0.0
        %1326 = vmatprep.subr.mxu0 0.0
        %1327 = vmatpush1.msra.mxu0 0.0
        %1328 = vmatprep.subr.mxu0 0.0
        %1329 = vmatpush1.msra.mxu0 0.0
        %1330 = vmatprep.subr.mxu0 0.0
        %1331 = vmatpush1.msra.mxu0 0.0
        %1332 = vmatprep.subr.mxu0 0.0
        %1333 = vmatpush1.msra.mxu0 0.0
        %1334 = vmatprep.subr.mxu0 0.0
        %1335 = vmatpush1.msra.mxu0 0.0
        %1336 = vmatprep.subr.mxu0 0.0
        %1337 = vmatpush1.msra.mxu0 0.0
        %1338 = vmatprep.subr.mxu0 0.0
        %1339 = vmatpush1.msra.mxu0 0.0
        %1340 = vmatprep.subr.mxu0 0.0
        %1341 = vmatpush1.msra.mxu0 0.0
        %1342 = vmatprep.subr.mxu0 0.0
        %1343 = vmatpush1.msra.mxu0 0.0
        %1344 = vmatprep.subr.mxu0 0.0
        %1345 = vmatpush1.msra.mxu0 0.0
        %1346 = vmatprep.subr.mxu0 0.0
        %1347 = vmatpush1.msra.mxu0 0.0
        %1348 = vmatprep.subr.mxu0 0.0
        %1349 = vmatpush1.msra.mxu0 0.0
        %1350 = vmatprep.subr.mxu0 0.0
        %1351 = vmatpush1.msra.mxu0 0.0
        %1352 = vmatprep.subr.mxu0 0.0
        %1353 = vmatpush1.msra.mxu0 0.0
        %1354 = vmatprep.subr.mxu0 0.0
        %1355 = vmatpush1.msra.mxu0 0.0
        %1356 = vmatprep.subr.mxu0 0.0
        %1357 = vmatpush1.msra.mxu0 0.0
        %1358 = vmatprep.subr.mxu0 0.0
        %1359 = vmatpush1.msra.mxu0 0.0
        %1360 = vmatprep.subr.mxu0 0.0
        %1361 = vmatpush1.msra.mxu0 0.0
        %1362 = vmatprep.subr.mxu0 0.0
        %1363 = vmatpush1.msra.mxu0 0.0
        %1364 = vmatprep.subr.mxu0 0.0
        %1365 = vmatpush1.msra.mxu0 0.0
        %1366 = vmatprep.mubr.f32.mxu0 0.0
        %v1367 = vand.u32 %v620, 4294901760
        %1368 = vmatmul.mubr.f32.gmra.mrb[0].mxu0 %v1367
        %v1369 = vpop.f32.mrb[0].mxu0
        %v1370 = vadd.f32 %v1205, %v1369
        %v1371 = vpop.f32.mrb[0].mxu0
        %v1372 = vadd.f32 %v1207, %v1371
        %1373 = vmatprep.mubr.f32.mxu0 0.0
        %v1374 = vand.u32 %v623, 4294901760
        %1375 = vmatmul.mubr.f32.gmra.mrb[0].mxu0 %v1374
        %v1376 = vpop.f32.mrb[0].mxu0
        %v1377 = vadd.f32 %v1214, %v1376
        %v1378 = vpop.f32.mrb[0].mxu0
        %v1379 = vadd.f32 %v1216, %v1378
        %1380 = vmatprep.mubr.f32.mxu0 0.0
        %v1381 = vand.u32 %v626, 4294901760
        %1382 = vmatmul.mubr.f32.gmra.mrb[0].mxu0 %v1381
        %v1383 = vpop.f32.mrb[0].mxu0
        %v1384 = vadd.f32 %v1223, %v1383
        %v1385 = vpop.f32.mrb[0].mxu0
        %v1386 = vadd.f32 %v1225, %v1385
        %1387 = vmatprep.mubr.f32.mxu0 0.0
        %v1388 = vand.u32 %v629, 4294901760
        %1389 = vmatmul.mubr.f32.gmra.mrb[0].mxu0 %v1388
        %v1390 = vpop.f32.mrb[0].mxu0
        %v1391 = vadd.f32 %v1232, %v1390
        %v1392 = vpop.f32.mrb[0].mxu0
        %v1393 = vadd.f32 %v1234, %v1392
        %1394 = vdwg.mxu0
        %v1395 = vand.u32 %v593, 4294901760
        %1396 = vmatprep.subr.mxu0 %v1395
        %v1397 = vand.u32 %v592, 4294901760
        %1398 = vmatpush1.msra.mxu0 %v1397
        %v1399 = vand.u32 %v595, 4294901760
        %1400 = vmatprep.subr.mxu0 %v1399
        %v1401 = vand.u32 %v594, 4294901760
        %1402 = vmatpush1.msra.mxu0 %v1401
        %v1403 = vand.u32 %v597, 4294901760
        %1404 = vmatprep.subr.mxu0 %v1403
        %v1405 = vand.u32 %v596, 4294901760
        %1406 = vmatpush1.msra.mxu0 %v1405
        %v1407 = vand.u32 %v599, 4294901760
        %1408 = vmatprep.subr.mxu0 %v1407
        %v1409 = vand.u32 %v598, 4294901760
        %1410 = vmatpush1.msra.mxu0 %v1409
        %v1411 = vand.u32 %v601, 4294901760
        %1412 = vmatprep.subr.mxu0 %v1411
        %v1413 = vand.u32 %v600, 4294901760
        %1414 = vmatpush1.msra.mxu0 %v1413
        %v1415 = vand.u32 %v603, 4294901760
        %1416 = vmatprep.subr.mxu0 %v1415
        %v1417 = vand.u32 %v602, 4294901760
        %1418 = vmatpush1.msra.mxu0 %v1417
        %v1419 = vand.u32 %v605, 4294901760
        %1420 = vmatprep.subr.mxu0 %v1419
        %v1421 = vand.u32 %v604, 4294901760
        %1422 = vmatpush1.msra.mxu0 %v1421
        %v1423 = vand.u32 %v607, 4294901760
        %1424 = vmatprep.subr.mxu0 %v1423
        %v1425 = vand.u32 %v606, 4294901760
        %1426 = vmatpush1.msra.mxu0 %v1425
        %v1427 = vand.u32 %v609, 4294901760
        %1428 = vmatprep.subr.mxu0 %v1427
        %v1429 = vand.u32 %v608, 4294901760
        %1430 = vmatpush1.msra.mxu0 %v1429
        %v1431 = vand.u32 %v611, 4294901760
        %1432 = vmatprep.subr.mxu0 %v1431
        %v1433 = vand.u32 %v610, 4294901760
        %1434 = vmatpush1.msra.mxu0 %v1433
        %v1435 = vand.u32 %v636, 4294901760
        %1436 = vmatprep.subr.mxu0 %v1435
        %v1437 = vand.u32 %v633, 4294901760
        %1438 = vmatpush1.msra.mxu0 %v1437
        %1439 = vmatprep.subr.mxu0 0.0
        %1440 = vmatpush1.msra.mxu0 0.0
        %1441 = vmatprep.subr.mxu0 0.0
        %1442 = vmatpush1.msra.mxu0 0.0
        %1443 = vmatprep.subr.mxu0 0.0
        %1444 = vmatpush1.msra.mxu0 0.0
        %1445 = vmatprep.subr.mxu0 0.0
        %1446 = vmatpush1.msra.mxu0 0.0
        %1447 = vmatprep.subr.mxu0 0.0
        %1448 = vmatpush1.msra.mxu0 0.0
        %1449 = vmatprep.subr.mxu0 0.0
        %1450 = vmatpush1.msra.mxu0 0.0
        %1451 = vmatprep.subr.mxu0 0.0
        %1452 = vmatpush1.msra.mxu0 0.0
        %1453 = vmatprep.subr.mxu0 0.0
        %1454 = vmatpush1.msra.mxu0 0.0
        %1455 = vmatprep.subr.mxu0 0.0
        %1456 = vmatpush1.msra.mxu0 0.0
        %1457 = vmatprep.subr.mxu0 0.0
        %1458 = vmatpush1.msra.mxu0 0.0
        %1459 = vmatprep.subr.mxu0 0.0
        %1460 = vmatpush1.msra.mxu0 0.0
        %1461 = vmatprep.subr.mxu0 0.0
        %1462 = vmatpush1.msra.mxu0 0.0
        %1463 = vmatprep.subr.mxu0 0.0
        %1464 = vmatpush1.msra.mxu0 0.0
        %1465 = vmatprep.subr.mxu0 0.0
        %1466 = vmatpush1.msra.mxu0 0.0
        %1467 = vmatprep.subr.mxu0 0.0
        %1468 = vmatpush1.msra.mxu0 0.0
        %1469 = vmatprep.subr.mxu0 0.0
        %1470 = vmatpush1.msra.mxu0 0.0
        %1471 = vmatprep.subr.mxu0 0.0
        %1472 = vmatpush1.msra.mxu0 0.0
        %1473 = vmatprep.subr.mxu0 0.0
        %1474 = vmatpush1.msra.mxu0 0.0
        %1475 = vmatprep.subr.mxu0 0.0
        %1476 = vmatpush1.msra.mxu0 0.0
        %1477 = vmatprep.subr.mxu0 0.0
        %1478 = vmatpush1.msra.mxu0 0.0
        %1479 = vmatprep.subr.mxu0 0.0
        %1480 = vmatpush1.msra.mxu0 0.0
        %1481 = vmatprep.mubr.f32.mxu0 0.0
        %v1482 = vand.u32 %v620, 4294901760
        %1483 = vmatmul.mubr.f32.gmra.mrb[0].mxu0 %v1482
        %v1484 = vpop.f32.mrb[0].mxu0
        %v1485 = vadd.f32 %v1370, %v1484
        %v1486 = vpop.f32.mrb[0].mxu0
        %v1487 = vadd.f32 %v1372, %v1486
        %1488 = vmatprep.mubr.f32.mxu0 0.0
        %v1489 = vand.u32 %v623, 4294901760
        %1490 = vmatmul.mubr.f32.gmra.mrb[0].mxu0 %v1489
        %v1491 = vpop.f32.mrb[0].mxu0
        %v1492 = vadd.f32 %v1377, %v1491
        %v1493 = vpop.f32.mrb[0].mxu0
        %v1494 = vadd.f32 %v1379, %v1493
        %1495 = vmatprep.mubr.f32.mxu0 0.0
        %v1496 = vand.u32 %v626, 4294901760
        %1497 = vmatmul.mubr.f32.gmra.mrb[0].mxu0 %v1496
        %v1498 = vpop.f32.mrb[0].mxu0
        %v1499 = vadd.f32 %v1384, %v1498
        %v1500 = vpop.f32.mrb[0].mxu0
        %v1501 = vadd.f32 %v1386, %v1500
        %1502 = vmatprep.mubr.f32.mxu0 0.0
        %v1503 = vand.u32 %v629, 4294901760
        %1504 = vmatmul.mubr.f32.gmra.mrb[0].mxu0 %v1503
        %v1505 = vpop.f32.mrb[0].mxu0
        %v1506 = vadd.f32 %v1391, %v1505
        %v1507 = vpop.f32.mrb[0].mxu0
        %v1508 = vadd.f32 %v1393, %v1507
        %1509 = vdwg.mxu0
        %v1510 = vlaneseq
        %v1511 = vshrl.u32 %v1510, 7
        %v1512 = vsub.s32 0, %v1511
        %v1513 = vrot.slane %v202, %v1512
        %v1514 = vlaneseq
        %v1515 = vshrl.u32 %v1514, 7
        %v1516 = vsub.s32 4, %v1515
        %v1517 = vrot.slane %v202, %v1516
        %v1518 = vlaneseq
        %v1519 = vshrl.u32 %v1518, 7
        %v1520 = vsub.s32 0, %v1519
        %v1521 = vrot.slane %v1513, %v1520
        %v1522 = vlaneseq
        %v1523 = vshrl.u32 %v1522, 7
        %v1524 = vsub.s32 0, %v1523
        %v1525 = vrot.slane %v1517, %v1524
        %vm1526 = vcmp.eq.s32.totalorder %v207, %v1521
        %vm1527 = vcmp.eq.s32.totalorder %v207, %v1525
        %vm1528 = vcmp.eq.s32.totalorder %v208, %v1521
        %vm1529 = vcmp.eq.s32.totalorder %v208, %v1525
        %v1530 = vlaneseq
        %v1531 = vshrl.u32 %v1530, 7
        %v1532 = vsub.s32 0, %v1531
        %v1533 = vrot.slane %v256, %v1532
        %v1534 = vlaneseq
        %v1535 = vshrl.u32 %v1534, 7
        %v1536 = vsub.s32 4, %v1535
        %v1537 = vrot.slane %v256, %v1536
        %v1540 = vlaneseq
        %v1541 = vshrl.u32 %v1540, 7
        %v1542 = vsub.s32 0, %v1541
        %v1543 = vrot.slane %v1533, %v1542
        %v1544 = vlaneseq
        %v1545 = vshrl.u32 %v1544, 7
        %v1546 = vsub.s32 0, %v1545
        %v1547 = vrot.slane %v1537, %v1546
        %v1548 = vsel %vm1526, %v1543, 0.0
        %v1549 = vsel %vm1527, %v1547, 0.0
        %v1550 = vsel %vm1528, %v1543, 0.0
        %v1551 = vsel %vm1529, %v1547, 0.0
        %v1552 = vadd.s32 %v202, 1
        %v1553 = vlaneseq
        %v1554 = vshrl.u32 %v1553, 7
        %v1555 = vsub.s32 0, %v1554
        %v1556 = vrot.slane %v1552, %v1555
        %v1557 = vlaneseq
        %v1558 = vshrl.u32 %v1557, 7
        %v1559 = vsub.s32 4, %v1558
        %v1560 = vrot.slane %v1552, %v1559
        %v1561 = vlaneseq
        %v1562 = vshrl.u32 %v1561, 7
        %v1563 = vsub.s32 0, %v1562
        %v1564 = vrot.slane %v1556, %v1563
        %v1565 = vlaneseq
        %v1566 = vshrl.u32 %v1565, 7
        %v1567 = vsub.s32 0, %v1566
        %v1568 = vrot.slane %v1560, %v1567
        %vm1569 = vcmp.eq.s32.totalorder %v207, %v1564
        %vm1570 = vcmp.eq.s32.totalorder %v207, %v1568
        %vm1571 = vcmp.eq.s32.totalorder %v208, %v1564
        %vm1572 = vcmp.eq.s32.totalorder %v208, %v1568
        %v1573 = vlaneseq
        %v1574 = vshrl.u32 %v1573, 7
        %v1575 = vsub.s32 0, %v1574
        %v1576 = vrot.slane %v201, %v1575
        %v1577 = vlaneseq
        %v1578 = vshrl.u32 %v1577, 7
        %v1579 = vsub.s32 4, %v1578
        %v1580 = vrot.slane %v201, %v1579
        %v1583 = vlaneseq
        %v1584 = vshrl.u32 %v1583, 7
        %v1585 = vsub.s32 0, %v1584
        %v1586 = vrot.slane %v1576, %v1585
        %v1587 = vlaneseq
        %v1588 = vshrl.u32 %v1587, 7
        %v1589 = vsub.s32 0, %v1588
        %v1590 = vrot.slane %v1580, %v1589
        %v1591 = vsel %vm1569, %v1586, 0.0
        %v1592 = vsel %vm1570, %v1590, 0.0
        %v1593 = vsel %vm1571, %v1586, 0.0
        %v1594 = vsel %vm1572, %v1590, 0.0
        %v1595 = vadd.f32 %v1548, %v1591
        %v1596 = vadd.f32 %v1549, %v1592
        %v1597 = vadd.f32 %v1550, %v1593
        %v1598 = vadd.f32 %v1551, %v1594
        %v1599 = vmul.f32 %v1485, %v1595
        %v1600 = vmul.f32 %v1487, %v1596
        %v1601 = vmul.f32 %v1492, %v1597
        %v1602 = vmul.f32 %v1494, %v1598
        %v1603 = vsel %vm631, %v1601, 0.0
        %v1604 = vadd.f32 %v1599, %v1603
        %v1605 = vrot.slane %v1604, 4
        %v1606 = vadd.f32 %v1604, %v1605
        %v1607 = vrot.slane %v1606, 2
        %v1608 = vadd.f32 %v1606, %v1607
        %v1609 = vrot.slane %v1608, 1
        %v1610 = vadd.f32 %v1608, %v1609
        %v1611 = vsel %vm631, %v1602, 0.0
        %v1612 = vadd.f32 %v1600, %v1611
        %v1613 = vrot.slane %v1612, 4
        %v1614 = vadd.f32 %v1612, %v1613
        %v1615 = vrot.slane %v1614, 2
        %v1616 = vadd.f32 %v1614, %v1615
        %v1617 = vrot.slane %v1616, 1
        %v1618 = vadd.f32 %v1616, %v1617
        %v1623 = vrot.slane %v1595, 7
        %v1624 = vrot.slane %v1596, 7
        %v1625 = vrot.slane %v1597, 7
        %v1626 = vsel %vm631, %v1623, %v1625
        %v1627 = vrot.slane %v1598, 7
        %v1628 = vsel %vm631, %v1624, %v1627
        %v1633 = vmul.f32 %v1492, %v1623
        %v1634 = vmul.f32 %v1494, %v1624
        %v1635 = vmul.f32 %v1499, %v1626
        %v1636 = vmul.f32 %v1501, %v1628
        %vm1641 = vcmask 1046528
        %v1642 = vrot.slane %v1633, 1
        %v1643 = vrot.slane %v1635, 1
        %v1644 = vsel %vm1641, %v1642, %v1643
        %v1645 = vrot.slane %v1634, 1
        %v1646 = vrot.slane %v1636, 1
        %v1647 = vsel %vm1641, %v1645, %v1646
        %v1652 = vsel %vm631, %v1643, 0.0
        %v1653 = vadd.f32 %v1644, %v1652
        %v1654 = vrot.slane %v1653, 4
        %v1655 = vadd.f32 %v1653, %v1654
        %v1656 = vrot.slane %v1655, 2
        %v1657 = vadd.f32 %v1655, %v1656
        %v1658 = vrot.slane %v1657, 1
        %v1659 = vadd.f32 %v1657, %v1658
        %v1660 = vsel %vm631, %v1646, 0.0
        %v1661 = vadd.f32 %v1647, %v1660
        %v1662 = vrot.slane %v1661, 4
        %v1663 = vadd.f32 %v1661, %v1662
        %v1664 = vrot.slane %v1663, 2
        %v1665 = vadd.f32 %v1663, %v1664
        %v1666 = vrot.slane %v1665, 1
        %v1667 = vadd.f32 %v1665, %v1666
        %vm1668 = vcmask 1041408
        %v1669 = vrot.slane %v1595, 6
        %v1670 = vrot.slane %v1596, 6
        %v1671 = vrot.slane %v1597, 6
        %v1672 = vsel %vm1668, %v1669, %v1671
        %v1673 = vrot.slane %v1598, 6
        %v1674 = vsel %vm1668, %v1670, %v1673
        %v1679 = vmul.f32 %v1499, %v1669
        %v1680 = vmul.f32 %v1501, %v1670
        %v1681 = vmul.f32 %v1506, %v1672
        %v1682 = vmul.f32 %v1508, %v1674
        %vm1687 = vcmask 1045504
        %v1688 = vrot.slane %v1679, 2
        %v1689 = vrot.slane %v1681, 2
        %v1690 = vsel %vm1687, %v1688, %v1689
        %v1691 = vrot.slane %v1680, 2
        %v1692 = vrot.slane %v1682, 2
        %v1693 = vsel %vm1687, %v1691, %v1692
        %v1698 = vsel %vm631, %v1689, 0.0
        %v1699 = vadd.f32 %v1690, %v1698
        %v1700 = vrot.slane %v1699, 4
        %v1701 = vadd.f32 %v1699, %v1700
        %v1702 = vrot.slane %v1701, 2
        %v1703 = vadd.f32 %v1701, %v1702
        %v1704 = vrot.slane %v1703, 1
        %v1705 = vadd.f32 %v1703, %v1704
        %v1706 = vsel %vm631, %v1692, 0.0
        %v1707 = vadd.f32 %v1693, %v1706
        %v1708 = vrot.slane %v1707, 4
        %v1709 = vadd.f32 %v1707, %v1708
        %v1710 = vrot.slane %v1709, 2
        %v1711 = vadd.f32 %v1709, %v1710
        %v1712 = vrot.slane %v1711, 1
        %v1713 = vadd.f32 %v1711, %v1712
        %v1714 = vsel %vm631, %v1610, %v1659
        %v1715 = vsel %vm631, %v1618, %v1667
        %v1716 = vsel %vm1668, %v1714, %v1705
        %v1717 = vsel %vm1668, %v1715, %v1713
        %v1720 = vcombine.low %v1716, %v1717
        %1722 = vst [vmem:[%s196] sm:$0x77] %v1720
        %s1723 = smul.u32 2, %s19
        %p1724 = scmp.lt.s32.totalorder %s18, 1
        %s1725 = scalar_select %p1724, %s18, 1
        %p1726 = scmp.lt.s32.totalorder %s1723, 1
        %s1727 = scalar_select %p1726, %s1723, 1
        %s1728 = smul.addr %s1725, 2
        %s1729 = sadd.s32 %s1727, %s1728
        %s1730 = smul.addr %s1729, 4
        %s1731 = scalar_lea.vmem %s2, %s1730
        // Predicated region
        $region33: #{tpu_custom_call.1} parent=27 // pred_check
          %p1732 = pneg %p95
        $region34: #{tpu_custom_call.1} parent=27 // pred_check_branch
          %1734 = sbr.rel (%p1732) target = $region36
        $region35: #{tpu_custom_call.1} parent=27 // pred_region
          %s1735 = smul.u32 2, %s19
        $region36: #{tpu_custom_call.1} parent=27 // pred_fallthru
          _
      $region28: #{tpu_custom_call.1} parent=5 // pred_fallthru
        _
      %p1736 = scmp.le.s32.totalorder 2, %s9
      // Predicated region
      $region37: #{tpu_custom_call.1} parent=5 // pred_check
        %p1737 = pneg %p1736
      $region38: #{tpu_custom_call.1} parent=5 // pred_check_branch
        %1739 = sbr.rel (%p1737) target = $region40
      $region39: #{tpu_custom_call.1} parent=5 // pred_region
        %s1740 = ssub.s32 %s9, 2
        // Predicated region
        $region41: #{tpu_custom_call.1} parent=39 // pred_check
          %p1741 = pneg %p101
        $region42: #{tpu_custom_call.1} parent=39 // pred_check_branch
          %1743 = sbr.rel (%p1741) target = $region44
        $region43: #{tpu_custom_call.1} parent=39 // pred_region
          %s1744 = smul.u32 2, %s21
          %p1745 = scmp.lt.s32.totalorder %s20, 1
          %s1746 = scalar_select %p1745, %s20, 1
          %p1747 = scmp.lt.s32.totalorder %s1744, 1
          %s1748 = scalar_select %p1747, %s1744, 1
          %s1749 = smul.addr %s1746, 2
          %s1750 = sadd.s32 %s1748, %s1749
          %s1751 = smul.addr %s1750, 4
          %s1752 = scalar_lea.vmem %s2, %s1751
        $region44: #{tpu_custom_call.1} parent=39 // pred_fallthru
          _
      $region40: #{tpu_custom_call.1} parent=5 // pred_fallthru
        _
    $region6: #{tpu_custom_call.1} parent=1 // loop_footer
      %s13 = sadd.s32 1, %s9
    $region7: #{tpu_custom_call.1} parent=1 // loop_footer_branch
      %8 = sbr.rel target = $region3
    $region8: #{tpu_custom_call.1} parent=1 // loop_exit
      _
    %1753 = vsyncpa [#allocation3], 1
    %s1754 = scalar_lea.sflag [#allocation3], 1
    %1755 = vsyncpa %s1754, 1

</llo_original>
